<compile_context>
chip_gen: v5e
topology: v5e:2x2
jax: 0.10.0
libtpu: 0.0.40
codegen_flags: <defaults>
</compile_context>

<pallas_src>
import functools

import jax
import jax.numpy as jnp
from jax import lax
from jax.experimental import pallas as pl
from jax.experimental.pallas import tpu as pltpu


KH = 7     # unified tap-grid size (3x3 and 5x5 kernels are zero-embedded)
PAD = 3    # spatial padding for the 7x7 grid


def _ceil_div(a, b):
    return -(-a // b)


def _choose_batch_tile(n, per_img_bytes, budget_bytes):
    """Images per grid step, derived from a VMEM byte budget.

    Prefers >= 2 grid steps and an even step count so v7x's two TensorCores
    both get work with dimension_semantics=("parallel",).
    """
    nb = max(1, min(n, budget_bytes // max(per_img_bytes, 1)))
    if n >= 2:
        nb = min(nb, _ceil_div(n, 2))          # at least two tiles
    for cand in range(nb, 0, -1):
        if _ceil_div(n, cand) % 2 == 0:        # prefer an even tile count
            return cand
    return nb


# ----------------------------------------------------------------------------
# Shared conv body: 7 accumulating MXU matmuls against block-Toeplitz weights
# ----------------------------------------------------------------------------
def _conv_acc(x_ref, w_ref, h):
    # x_ref : (NB, Hp, Wp*Cin)      bf16 padded inputs, natural layout
    # w_ref : (KH, Wp*Cin, W*Ctot)  bf16 block-Toeplitz weights
    # returns (NB*H, W*Ctot) f32
    xb = x_ref[...]
    nb, _, kin = xb.shape
    rows = nb * h
    acc = None
    for kh in range(KH):                                  # static, unrolled
        lhs = xb[:, kh:kh + h, :].reshape(rows, kin)
        part = jnp.dot(lhs, w_ref[kh], preferred_element_type=jnp.float32)
        acc = part if acc is None else acc + part
    return acc


# ----------------------------------------------------------------------------
# Kernel 1: BN partial statistics only (no conv intermediate written to HBM)
# ----------------------------------------------------------------------------
def _stats_kernel(x_ref, w_ref, sum_ref, sumsq_ref, *, h):
    acc = _conv_acc(x_ref, w_ref, h)
    acc3 = acc.reshape(-1, 8, acc.shape[-1])              # split sublane axis only
    sum_ref[...] = jnp.sum(acc3, axis=0)
    sumsq_ref[...] = jnp.sum(acc3 * acc3, axis=0)


# ----------------------------------------------------------------------------
# Kernel 2: recompute conv + fused affine BatchNorm + ReLU, bf16 output
# ----------------------------------------------------------------------------
def _conv_bn_relu_kernel(x_ref, w_ref, scale_ref, shift_ref, o_ref, *, h):
    acc = _conv_acc(x_ref, w_ref, h)
    y = jnp.maximum(acc * scale_ref[...] + shift_ref[...], 0.0)
    o_ref[...] = y.astype(o_ref.dtype)


# ----------------------------------------------------------------------------
# Wrapper: weight packing (tiny), BN scalar finalize, NCHW plumbing
# ----------------------------------------------------------------------------
def multi_res_mlp(x_nchw, params, eps=1e-5):
    x = jnp.transpose(x_nchw, (0, 2, 3, 1))                     # NCHW -> NHWC
    N, H, W, Cin = x.shape
    Cout = params["w3"].shape[0]
    Ctot = 3 * Cout
    if H % 8 != 0:
        # TODO(synk): pad H to a multiple of 8 (sublane tile) instead of bailing.
        raise NotImplementedError("H must be a multiple of 8")

    Hp, Wp = H + 2 * PAD, W + 2 * PAD
    Kin = Wp * Cin                     # contraction width per tap-row
    L = W * Ctot                       # lane-dense output width per image row

    # --- combined conv weight: embed 3x3/5x5 taps into a 7x7 grid, concat Cout
    def embed7(w_oihw):
        k = w_oihw.shape[-1]
        w = jnp.transpose(w_oihw, (2, 3, 1, 0)).astype(jnp.float32)   # -> HWIO
        off = (KH - k) // 2
        return jnp.pad(w, ((off, off), (off, off), (0, 0), (0, 0)))

    wconv = jnp.concatenate(
        [embed7(params["w3"]), embed7(params["w5"]), embed7(params["w7"])],
        axis=-1)                                            # (7, 7, Cin, Ctot)

    # --- block-Toeplitz expansion along width:
    #     w2[kh, wp*Cin+ci, w*Ctot+c] = wconv[kh, wp-w, ci, c]  if 0 <= wp-w < 7
    d = jnp.arange(Wp)[None, :] - jnp.arange(W)[:, None]    # (W, Wp)
    valid = ((d >= 0) & (d < KH)).astype(jnp.float32)
    kw_idx = jnp.clip(d, 0, KH - 1)
    w2 = wconv[:, kw_idx, :, :] * valid[None, :, :, None, None]   # (7,W,Wp,Cin,Ctot)
    w2 = jnp.transpose(w2, (0, 2, 3, 1, 4)).reshape(KH, Kin, L).astype(jnp.bfloat16)

    # --- padded input: bf16 BEFORE any materialization, flattened to (N,Hp,Wp*Cin)
    xp = jnp.pad(x.astype(jnp.bfloat16), ((0, 0), (PAD, PAD), (PAD, PAD), (0, 0)))
    xflat = xp.reshape(N, Hp, Kin)

    # --- batch-tile size from a VMEM budget (v7x has only 64 MiB of VMEM)
    per_img = (2 * Hp * Kin * 2        # double-buffered bf16 input
               + 2 * H * L * 2         # double-buffered bf16 output (pass 2)
               + 3 * H * L * 4)        # f32 conv accumulator + temporaries
    NB = _choose_batch_tile(N, per_img, budget_bytes=24 * 1024 * 1024)
    n_tiles = _ceil_div(N, NB)
    Np = n_tiles * NB
    if Np != N:
        # zero images -> exactly-zero conv output -> no effect on BN statistics
        xflat = jnp.pad(xflat, ((0, Np - N), (0, 0), (0, 0)))

    cparams = pltpu.CompilerParams(
        dimension_semantics=("parallel",),
        vmem_limit_bytes=48 * 1024 * 1024,   # under v7x's 64 MiB, fine on v5e/v6e
    )

    x_spec = pl.BlockSpec((NB, Hp, Kin), lambda t: (t, 0, 0))
    # Grid-invariant weight block (~MiBs).  Default double-buffering fits the
    # budget here; pl.Buffered(1) would reclaim one copy if VMEM gets tight.
    w_spec = pl.BlockSpec((KH, Kin, L), lambda t: (0, 0, 0))

    # --- pass 1: BN partial statistics only
    sums, sumsqs = pl.pallas_call(
        functools.partial(_stats_kernel, h=H),
        out_shape=(jax.ShapeDtypeStruct((n_tiles * 8, L), jnp.float32),
                   jax.ShapeDtypeStruct((n_tiles * 8, L), jnp.float32)),
        grid=(n_tiles,),
        in_specs=[x_spec, w_spec],
        out_specs=(pl.BlockSpec((8, L), lambda t: (t, 0)),
                   pl.BlockSpec((8, L), lambda t: (t, 0))),
        compiler_params=cparams,
    )(xflat, w2)

    # --- finalize BatchNorm (training mode, biased variance) in XLA (tiny work)
    cnt = jnp.float32(N * H * W)
    ssum = jnp.sum(sums.reshape(-1, W, Ctot), axis=(0, 1))
    ssq = jnp.sum(sumsqs.reshape(-1, W, Ctot), axis=(0, 1))
    mean = ssum / cnt
    var = ssq / cnt - mean * mean      # E[x^2]-E[x]^2; bias folding keeps it conditioned
    gamma = params["gamma"].astype(jnp.float32)
    beta = params["beta"].astype(jnp.float32)
    scale = gamma * lax.rsqrt(var + eps)
    shift = beta - mean * scale
    scale_row = jnp.tile(scale, (W,)).reshape(1, L)        # index m = w*Ctot + c
    shift_row = jnp.tile(shift, (W,)).reshape(1, L)

    # --- pass 2: recompute conv (MXU slack) + fused BN + ReLU, bf16 output
    y_flat = pl.pallas_call(
        functools.partial(_conv_bn_relu_kernel, h=H),
        out_shape=jax.ShapeDtypeStruct((Np * H, L), jnp.bfloat16),
        grid=(n_tiles,),
        in_specs=[x_spec, w_spec,
                  pl.BlockSpec((1, L), lambda t: (0, 0)),
                  pl.BlockSpec((1, L), lambda t: (0, 0))],
        out_specs=pl.BlockSpec((NB * H, L), lambda t: (t, 0)),
        compiler_params=cparams,
    )(xflat, w2, scale_row, shift_row)

    # --- back to NCHW f32 to match the PyTorch module's output contract.
    # TODO(synk): keep NHWC/bf16 if the consumer allows; this transpose is an
    # extra HBM pass kept only to match nn.Module output layout exactly.
    y = y_flat[:N * H].reshape(N, H, W, Ctot).astype(jnp.float32)
    return jnp.transpose(y, (0, 3, 1, 2))


# ----------------------------------------------------------------------------
# Pure-JAX reference (f32 end-to-end, for correctness check)
# ----------------------------------------------------------------------------
def reference(x_nchw, params, eps=1e-5):
    def conv(x, w, b, p):
        y = lax.conv_general_dilated(
            x, w, window_strides=(1, 1), padding=[(p, p), (p, p)],
            dimension_numbers=("NCHW", "OIHW", "NCHW"),
            precision=lax.Precision.HIGHEST)
        return y + b.reshape(1, -1, 1, 1)

    y1 = conv(x_nchw, params["w3"], params["b3"], 1)
    y2 = conv(x_nchw, params["w5"], params["b5"], 2)
    y3 = conv(x_nchw, params["w7"], params["b7"], 3)
    out = jnp.concatenate([y1, y2, y3], axis=1)
    mean = out.mean(axis=(0, 2, 3), keepdims=True)
    var = out.var(axis=(0, 2, 3), keepdims=True)           # biased
    g = params["gamma"].reshape(1, -1, 1, 1)
    b = params["beta"].reshape(1, -1, 1, 1)
    out = (out - mean) / jnp.sqrt(var + eps) * g + b
    return jnp.maximum(out, 0.0)


if __name__ == "__main__":
    N, Cin, H, W = 2, 4, 16, 16
    Cout = 8

    key = jax.random.PRNGKey(0)
    ks = jax.random.split(key, 8)
    params = {
        "w3": jax.random.normal(ks[0], (Cout, Cin, 3, 3), jnp.float32) * 0.1,
        "b3": jax.random.normal(ks[1], (Cout,), jnp.float32) * 0.1,
        "w5": jax.random.normal(ks[2], (Cout, Cin, 5, 5), jnp.float32) * 0.1,
        "b5": jax.random.normal(ks[3], (Cout,), jnp.float32) * 0.1,
        "w7": jax.random.normal(ks[4], (Cout, Cin, 7, 7), jnp.float32) * 0.1,
        "b7": jax.random.normal(ks[5], (Cout,), jnp.float32) * 0.1,
        "gamma": jnp.ones((3 * Cout,), jnp.float32),        # BN weight init
        "beta": jnp.zeros((3 * Cout,), jnp.float32),        # BN bias init
    }
    x = jax.random.normal(ks[6], (N, Cin, H, W), jnp.float32)

    mlp = jax.jit(multi_res_mlp)
    out = jax.block_until_ready(mlp(x, params))

    ref = reference(x, params)
    max_err = float(jnp.max(jnp.abs(out - ref)))
    assert out.shape == (N, 3 * Cout, H, W), out.shape
    # bf16 MXU inputs + bf16 output store vs an f32 HIGHEST-precision reference:
    # post-BN values are ~N(0,1) (|z| <~ 4.5), so bf16 quantization plus the
    # bf16 matmul error bounds the max abs error well below 5e-2.
    assert max_err < 5e-2, f"max abs error too large: {max_err}"

    print("KERNEL_OK")
</pallas_src>

<mosaic_0001>
module attributes {stable_mosaic.version = 11 : i64} {
  func.func @_stats_kernel(%arg0: i32, %arg1: memref<1x22x88xbf16, #tpu.memory_space<vmem>>, %arg2: memref<7x88x384xbf16, #tpu.memory_space<vmem>>, %arg3: memref<8x384xf32, #tpu.memory_space<vmem>>, %arg4: memref<8x384xf32, #tpu.memory_space<vmem>>) attributes {dimension_semantics = [#tpu.dimension_semantics<parallel>], iteration_bounds = array<i64: 2>, scalar_prefetch = 0 : i64, scratch_operands = 0 : i64, tpu.core_type = #tpu.core_type<tc>, window_params = [{transform_indices = @transform_0, window_bounds = array<i64: 1, 22, 88>}, {pipeline_mode = #tpu.pipeline_mode<synchronous>, transform_indices = @transform_1, window_bounds = array<i64: 7, 88, 384>}, {transform_indices = @transform_2, window_bounds = array<i64: 8, 384>}, {transform_indices = @transform_3, window_bounds = array<i64: 8, 384>}]} {
    %c0 = arith.constant 0 : index
    %c0_0 = arith.constant 0 : index
    %c0_1 = arith.constant 0 : index
    %0 = vector.load %arg1[%c0, %c0_0, %c0_1] : memref<1x22x88xbf16, #tpu.memory_space<vmem>>, vector<1x22x88xbf16>
    %1 = vector.extract_strided_slice %0 {offsets = [0, 0, 0], sizes = [1, 16, 88], strides = [1, 1, 1]} : vector<1x22x88xbf16> to vector<1x16x88xbf16>
    %2 = vector.shape_cast %1 : vector<1x16x88xbf16> to vector<16x88xbf16>
    %c0_2 = arith.constant 0 : index
    %c0_3 = arith.constant 0 : index
    %c0_4 = arith.constant 0 : index
    %3 = vector.load %arg2[%c0_2, %c0_3, %c0_4] : memref<7x88x384xbf16, #tpu.memory_space<vmem>>, vector<1x88x384xbf16>
    %4 = vector.shape_cast %3 : vector<1x88x384xbf16> to vector<88x384xbf16>
    %cst = arith.constant dense<0.000000e+00> : vector<16x384xf32>
    %5 = tpu.matmul %2, %4, %cst {dimension_numbers = #tpu.dot_dimension_numbers<[1], [0], [0], [1], [0, 0, 1, 1], [], []>} : vector<16x88xbf16>, vector<88x384xbf16>, vector<16x384xf32> -> vector<16x384xf32>
    %6 = vector.extract_strided_slice %0 {offsets = [0, 1, 0], sizes = [1, 16, 88], strides = [1, 1, 1]} : vector<1x22x88xbf16> to vector<1x16x88xbf16>
    %7 = vector.shape_cast %6 : vector<1x16x88xbf16> to vector<16x88xbf16>
    %c1 = arith.constant 1 : index
    %c0_5 = arith.constant 0 : index
    %c0_6 = arith.constant 0 : index
    %8 = vector.load %arg2[%c1, %c0_5, %c0_6] : memref<7x88x384xbf16, #tpu.memory_space<vmem>>, vector<1x88x384xbf16>
    %9 = vector.shape_cast %8 : vector<1x88x384xbf16> to vector<88x384xbf16>
    %cst_7 = arith.constant dense<0.000000e+00> : vector<16x384xf32>
    %10 = tpu.matmul %7, %9, %cst_7 {dimension_numbers = #tpu.dot_dimension_numbers<[1], [0], [0], [1], [0, 0, 1, 1], [], []>} : vector<16x88xbf16>, vector<88x384xbf16>, vector<16x384xf32> -> vector<16x384xf32>
    %11 = arith.addf %5, %10 : vector<16x384xf32>
    %12 = vector.extract_strided_slice %0 {offsets = [0, 2, 0], sizes = [1, 16, 88], strides = [1, 1, 1]} : vector<1x22x88xbf16> to vector<1x16x88xbf16>
    %13 = vector.shape_cast %12 : vector<1x16x88xbf16> to vector<16x88xbf16>
    %c2 = arith.constant 2 : index
    %c0_8 = arith.constant 0 : index
    %c0_9 = arith.constant 0 : index
    %14 = vector.load %arg2[%c2, %c0_8, %c0_9] : memref<7x88x384xbf16, #tpu.memory_space<vmem>>, vector<1x88x384xbf16>
    %15 = vector.shape_cast %14 : vector<1x88x384xbf16> to vector<88x384xbf16>
    %cst_10 = arith.constant dense<0.000000e+00> : vector<16x384xf32>
    %16 = tpu.matmul %13, %15, %cst_10 {dimension_numbers = #tpu.dot_dimension_numbers<[1], [0], [0], [1], [0, 0, 1, 1], [], []>} : vector<16x88xbf16>, vector<88x384xbf16>, vector<16x384xf32> -> vector<16x384xf32>
    %17 = arith.addf %11, %16 : vector<16x384xf32>
    %18 = vector.extract_strided_slice %0 {offsets = [0, 3, 0], sizes = [1, 16, 88], strides = [1, 1, 1]} : vector<1x22x88xbf16> to vector<1x16x88xbf16>
    %19 = vector.shape_cast %18 : vector<1x16x88xbf16> to vector<16x88xbf16>
    %c3 = arith.constant 3 : index
    %c0_11 = arith.constant 0 : index
    %c0_12 = arith.constant 0 : index
    %20 = vector.load %arg2[%c3, %c0_11, %c0_12] : memref<7x88x384xbf16, #tpu.memory_space<vmem>>, vector<1x88x384xbf16>
    %21 = vector.shape_cast %20 : vector<1x88x384xbf16> to vector<88x384xbf16>
    %cst_13 = arith.constant dense<0.000000e+00> : vector<16x384xf32>
    %22 = tpu.matmul %19, %21, %cst_13 {dimension_numbers = #tpu.dot_dimension_numbers<[1], [0], [0], [1], [0, 0, 1, 1], [], []>} : vector<16x88xbf16>, vector<88x384xbf16>, vector<16x384xf32> -> vector<16x384xf32>
    %23 = arith.addf %17, %22 : vector<16x384xf32>
    %24 = vector.extract_strided_slice %0 {offsets = [0, 4, 0], sizes = [1, 16, 88], strides = [1, 1, 1]} : vector<1x22x88xbf16> to vector<1x16x88xbf16>
    %25 = vector.shape_cast %24 : vector<1x16x88xbf16> to vector<16x88xbf16>
    %c4 = arith.constant 4 : index
    %c0_14 = arith.constant 0 : index
    %c0_15 = arith.constant 0 : index
    %26 = vector.load %arg2[%c4, %c0_14, %c0_15] : memref<7x88x384xbf16, #tpu.memory_space<vmem>>, vector<1x88x384xbf16>
    %27 = vector.shape_cast %26 : vector<1x88x384xbf16> to vector<88x384xbf16>
    %cst_16 = arith.constant dense<0.000000e+00> : vector<16x384xf32>
    %28 = tpu.matmul %25, %27, %cst_16 {dimension_numbers = #tpu.dot_dimension_numbers<[1], [0], [0], [1], [0, 0, 1, 1], [], []>} : vector<16x88xbf16>, vector<88x384xbf16>, vector<16x384xf32> -> vector<16x384xf32>
    %29 = arith.addf %23, %28 : vector<16x384xf32>
    %30 = vector.extract_strided_slice %0 {offsets = [0, 5, 0], sizes = [1, 16, 88], strides = [1, 1, 1]} : vector<1x22x88xbf16> to vector<1x16x88xbf16>
    %31 = vector.shape_cast %30 : vector<1x16x88xbf16> to vector<16x88xbf16>
    %c5 = arith.constant 5 : index
    %c0_17 = arith.constant 0 : index
    %c0_18 = arith.constant 0 : index
    %32 = vector.load %arg2[%c5, %c0_17, %c0_18] : memref<7x88x384xbf16, #tpu.memory_space<vmem>>, vector<1x88x384xbf16>
    %33 = vector.shape_cast %32 : vector<1x88x384xbf16> to vector<88x384xbf16>
    %cst_19 = arith.constant dense<0.000000e+00> : vector<16x384xf32>
    %34 = tpu.matmul %31, %33, %cst_19 {dimension_numbers = #tpu.dot_dimension_numbers<[1], [0], [0], [1], [0, 0, 1, 1], [], []>} : vector<16x88xbf16>, vector<88x384xbf16>, vector<16x384xf32> -> vector<16x384xf32>
    %35 = arith.addf %29, %34 : vector<16x384xf32>
    %36 = vector.extract_strided_slice %0 {offsets = [0, 6, 0], sizes = [1, 16, 88], strides = [1, 1, 1]} : vector<1x22x88xbf16> to vector<1x16x88xbf16>
    %37 = vector.shape_cast %36 : vector<1x16x88xbf16> to vector<16x88xbf16>
    %c6 = arith.constant 6 : index
    %c0_20 = arith.constant 0 : index
    %c0_21 = arith.constant 0 : index
    %38 = vector.load %arg2[%c6, %c0_20, %c0_21] : memref<7x88x384xbf16, #tpu.memory_space<vmem>>, vector<1x88x384xbf16>
    %39 = vector.shape_cast %38 : vector<1x88x384xbf16> to vector<88x384xbf16>
    %cst_22 = arith.constant dense<0.000000e+00> : vector<16x384xf32>
    %40 = tpu.matmul %37, %39, %cst_22 {dimension_numbers = #tpu.dot_dimension_numbers<[1], [0], [0], [1], [0, 0, 1, 1], [], []>} : vector<16x88xbf16>, vector<88x384xbf16>, vector<16x384xf32> -> vector<16x384xf32>
    %41 = arith.addf %35, %40 : vector<16x384xf32>
    %42 = vector.shape_cast %41 : vector<16x384xf32> to vector<2x8x384xf32>
    %cst_23 = arith.constant dense<0.000000e+00> : vector<8x384xf32>
    %43 = vector.multi_reduction <add>, %42, %cst_23 [0] : vector<2x8x384xf32> to vector<8x384xf32>
    %c0_24 = arith.constant 0 : index
    %c0_25 = arith.constant 0 : index
    %44 = vector.load %arg3[%c0_24, %c0_25] : memref<8x384xf32, #tpu.memory_space<vmem>>, vector<8x384xf32>
    tpu.vector_store %arg3[%c0_24, %c0_25], %43 {strides = array<i32>} : memref<8x384xf32, #tpu.memory_space<vmem>>, vector<8x384xf32>,
    %45 = arith.mulf %42, %42 : vector<2x8x384xf32>
    %cst_26 = arith.constant dense<0.000000e+00> : vector<8x384xf32>
    %46 = vector.multi_reduction <add>, %45, %cst_26 [0] : vector<2x8x384xf32> to vector<8x384xf32>
    %c0_27 = arith.constant 0 : index
    %c0_28 = arith.constant 0 : index
    %47 = vector.load %arg4[%c0_27, %c0_28] : memref<8x384xf32, #tpu.memory_space<vmem>>, vector<8x384xf32>
    tpu.vector_store %arg4[%c0_27, %c0_28], %46 {strides = array<i32>} : memref<8x384xf32, #tpu.memory_space<vmem>>, vector<8x384xf32>,
    return
  }
  func.func @transform_0(%arg0: i32) -> (i32, i32, i32) {
    %c0_i32 = arith.constant 0 : i32
    %c0_i32_0 = arith.constant 0 : i32
    %c0_i32_1 = arith.constant 0 : i32
    return %arg0, %c0_i32, %c0_i32_0 : i32, i32, i32
  }
  func.func @transform_1(%arg0: i32) -> (i32, i32, i32) {
    %c0_i32 = arith.constant 0 : i32
    %c0_i32_0 = arith.constant 0 : i32
    %c0_i32_1 = arith.constant 0 : i32
    %c0_i32_2 = arith.constant 0 : i32
    return %c0_i32, %c0_i32_0, %c0_i32_1 : i32, i32, i32
  }
  func.func @transform_2(%arg0: i32) -> (i32, i32) {
    %c0_i32 = arith.constant 0 : i32
    %c0_i32_0 = arith.constant 0 : i32
    return %arg0, %c0_i32 : i32, i32
  }
  func.func @transform_3(%arg0: i32) -> (i32, i32) {
    %c0_i32 = arith.constant 0 : i32
    %c0_i32_0 = arith.constant 0 : i32
    return %arg0, %c0_i32 : i32, i32
  }
}

module attributes {stable_mosaic.version = 11 : i64} {
  func.func @_conv_bn_relu_kernel(%arg0: i32, %arg1: memref<1x22x88xbf16, #tpu.memory_space<vmem>>, %arg2: memref<7x88x384xbf16, #tpu.memory_space<vmem>>, %arg3: memref<1x384xf32, #tpu.memory_space<vmem>>, %arg4: memref<1x384xf32, #tpu.memory_space<vmem>>, %arg5: memref<16x384xbf16, #tpu.memory_space<vmem>>) attributes {dimension_semantics = [#tpu.dimension_semantics<parallel>], iteration_bounds = array<i64: 2>, scalar_prefetch = 0 : i64, scratch_operands = 0 : i64, tpu.core_type = #tpu.core_type<tc>, window_params = [{transform_indices = @transform_0, window_bounds = array<i64: 1, 22, 88>}, {pipeline_mode = #tpu.pipeline_mode<synchronous>, transform_indices = @transform_1, window_bounds = array<i64: 7, 88, 384>}, {pipeline_mode = #tpu.pipeline_mode<synchronous>, transform_indices = @transform_2, window_bounds = array<i64: 1, 384>}, {pipeline_mode = #tpu.pipeline_mode<synchronous>, transform_indices = @transform_3, window_bounds = array<i64: 1, 384>}, {transform_indices = @transform_4, window_bounds = array<i64: 16, 384>}]} {
    %c0 = arith.constant 0 : index
    %c0_0 = arith.constant 0 : index
    %c0_1 = arith.constant 0 : index
    %0 = vector.load %arg1[%c0, %c0_0, %c0_1] : memref<1x22x88xbf16, #tpu.memory_space<vmem>>, vector<1x22x88xbf16>
    %1 = vector.extract_strided_slice %0 {offsets = [0, 0, 0], sizes = [1, 16, 88], strides = [1, 1, 1]} : vector<1x22x88xbf16> to vector<1x16x88xbf16>
    %2 = vector.shape_cast %1 : vector<1x16x88xbf16> to vector<16x88xbf16>
    %c0_2 = arith.constant 0 : index
    %c0_3 = arith.constant 0 : index
    %c0_4 = arith.constant 0 : index
    %3 = vector.load %arg2[%c0_2, %c0_3, %c0_4] : memref<7x88x384xbf16, #tpu.memory_space<vmem>>, vector<1x88x384xbf16>
    %4 = vector.shape_cast %3 : vector<1x88x384xbf16> to vector<88x384xbf16>
    %cst = arith.constant dense<0.000000e+00> : vector<16x384xf32>
    %5 = tpu.matmul %2, %4, %cst {dimension_numbers = #tpu.dot_dimension_numbers<[1], [0], [0], [1], [0, 0, 1, 1], [], []>} : vector<16x88xbf16>, vector<88x384xbf16>, vector<16x384xf32> -> vector<16x384xf32>
    %6 = vector.extract_strided_slice %0 {offsets = [0, 1, 0], sizes = [1, 16, 88], strides = [1, 1, 1]} : vector<1x22x88xbf16> to vector<1x16x88xbf16>
    %7 = vector.shape_cast %6 : vector<1x16x88xbf16> to vector<16x88xbf16>
    %c1 = arith.constant 1 : index
    %c0_5 = arith.constant 0 : index
    %c0_6 = arith.constant 0 : index
    %8 = vector.load %arg2[%c1, %c0_5, %c0_6] : memref<7x88x384xbf16, #tpu.memory_space<vmem>>, vector<1x88x384xbf16>
    %9 = vector.shape_cast %8 : vector<1x88x384xbf16> to vector<88x384xbf16>
    %cst_7 = arith.constant dense<0.000000e+00> : vector<16x384xf32>
    %10 = tpu.matmul %7, %9, %cst_7 {dimension_numbers = #tpu.dot_dimension_numbers<[1], [0], [0], [1], [0, 0, 1, 1], [], []>} : vector<16x88xbf16>, vector<88x384xbf16>, vector<16x384xf32> -> vector<16x384xf32>
    %11 = arith.addf %5, %10 : vector<16x384xf32>
    %12 = vector.extract_strided_slice %0 {offsets = [0, 2, 0], sizes = [1, 16, 88], strides = [1, 1, 1]} : vector<1x22x88xbf16> to vector<1x16x88xbf16>
    %13 = vector.shape_cast %12 : vector<1x16x88xbf16> to vector<16x88xbf16>
    %c2 = arith.constant 2 : index
    %c0_8 = arith.constant 0 : index
    %c0_9 = arith.constant 0 : index
    %14 = vector.load %arg2[%c2, %c0_8, %c0_9] : memref<7x88x384xbf16, #tpu.memory_space<vmem>>, vector<1x88x384xbf16>
    %15 = vector.shape_cast %14 : vector<1x88x384xbf16> to vector<88x384xbf16>
    %cst_10 = arith.constant dense<0.000000e+00> : vector<16x384xf32>
    %16 = tpu.matmul %13, %15, %cst_10 {dimension_numbers = #tpu.dot_dimension_numbers<[1], [0], [0], [1], [0, 0, 1, 1], [], []>} : vector<16x88xbf16>, vector<88x384xbf16>, vector<16x384xf32> -> vector<16x384xf32>
    %17 = arith.addf %11, %16 : vector<16x384xf32>
    %18 = vector.extract_strided_slice %0 {offsets = [0, 3, 0], sizes = [1, 16, 88], strides = [1, 1, 1]} : vector<1x22x88xbf16> to vector<1x16x88xbf16>
    %19 = vector.shape_cast %18 : vector<1x16x88xbf16> to vector<16x88xbf16>
    %c3 = arith.constant 3 : index
    %c0_11 = arith.constant 0 : index
    %c0_12 = arith.constant 0 : index
    %20 = vector.load %arg2[%c3, %c0_11, %c0_12] : memref<7x88x384xbf16, #tpu.memory_space<vmem>>, vector<1x88x384xbf16>
    %21 = vector.shape_cast %20 : vector<1x88x384xbf16> to vector<88x384xbf16>
    %cst_13 = arith.constant dense<0.000000e+00> : vector<16x384xf32>
    %22 = tpu.matmul %19, %21, %cst_13 {dimension_numbers = #tpu.dot_dimension_numbers<[1], [0], [0], [1], [0, 0, 1, 1], [], []>} : vector<16x88xbf16>, vector<88x384xbf16>, vector<16x384xf32> -> vector<16x384xf32>
    %23 = arith.addf %17, %22 : vector<16x384xf32>
    %24 = vector.extract_strided_slice %0 {offsets = [0, 4, 0], sizes = [1, 16, 88], strides = [1, 1, 1]} : vector<1x22x88xbf16> to vector<1x16x88xbf16>
    %25 = vector.shape_cast %24 : vector<1x16x88xbf16> to vector<16x88xbf16>
    %c4 = arith.constant 4 : index
    %c0_14 = arith.constant 0 : index
    %c0_15 = arith.constant 0 : index
    %26 = vector.load %arg2[%c4, %c0_14, %c0_15] : memref<7x88x384xbf16, #tpu.memory_space<vmem>>, vector<1x88x384xbf16>
    %27 = vector.shape_cast %26 : vector<1x88x384xbf16> to vector<88x384xbf16>
    %cst_16 = arith.constant dense<0.000000e+00> : vector<16x384xf32>
    %28 = tpu.matmul %25, %27, %cst_16 {dimension_numbers = #tpu.dot_dimension_numbers<[1], [0], [0], [1], [0, 0, 1, 1], [], []>} : vector<16x88xbf16>, vector<88x384xbf16>, vector<16x384xf32> -> vector<16x384xf32>
    %29 = arith.addf %23, %28 : vector<16x384xf32>
    %30 = vector.extract_strided_slice %0 {offsets = [0, 5, 0], sizes = [1, 16, 88], strides = [1, 1, 1]} : vector<1x22x88xbf16> to vector<1x16x88xbf16>
    %31 = vector.shape_cast %30 : vector<1x16x88xbf16> to vector<16x88xbf16>
    %c5 = arith.constant 5 : index
    %c0_17 = arith.constant 0 : index
    %c0_18 = arith.constant 0 : index
    %32 = vector.load %arg2[%c5, %c0_17, %c0_18] : memref<7x88x384xbf16, #tpu.memory_space<vmem>>, vector<1x88x384xbf16>
    %33 = vector.shape_cast %32 : vector<1x88x384xbf16> to vector<88x384xbf16>
    %cst_19 = arith.constant dense<0.000000e+00> : vector<16x384xf32>
    %34 = tpu.matmul %31, %33, %cst_19 {dimension_numbers = #tpu.dot_dimension_numbers<[1], [0], [0], [1], [0, 0, 1, 1], [], []>} : vector<16x88xbf16>, vector<88x384xbf16>, vector<16x384xf32> -> vector<16x384xf32>
    %35 = arith.addf %29, %34 : vector<16x384xf32>
    %36 = vector.extract_strided_slice %0 {offsets = [0, 6, 0], sizes = [1, 16, 88], strides = [1, 1, 1]} : vector<1x22x88xbf16> to vector<1x16x88xbf16>
    %37 = vector.shape_cast %36 : vector<1x16x88xbf16> to vector<16x88xbf16>
    %c6 = arith.constant 6 : index
    %c0_20 = arith.constant 0 : index
    %c0_21 = arith.constant 0 : index
    %38 = vector.load %arg2[%c6, %c0_20, %c0_21] : memref<7x88x384xbf16, #tpu.memory_space<vmem>>, vector<1x88x384xbf16>
    %39 = vector.shape_cast %38 : vector<1x88x384xbf16> to vector<88x384xbf16>
    %cst_22 = arith.constant dense<0.000000e+00> : vector<16x384xf32>
    %40 = tpu.matmul %37, %39, %cst_22 {dimension_numbers = #tpu.dot_dimension_numbers<[1], [0], [0], [1], [0, 0, 1, 1], [], []>} : vector<16x88xbf16>, vector<88x384xbf16>, vector<16x384xf32> -> vector<16x384xf32>
    %41 = arith.addf %35, %40 : vector<16x384xf32>
    %c0_23 = arith.constant 0 : index
    %c0_24 = arith.constant 0 : index
    %42 = vector.load %arg3[%c0_23, %c0_24] : memref<1x384xf32, #tpu.memory_space<vmem>>, vector<1x384xf32>
    %43 = vector.broadcast %42 : vector<1x384xf32> to vector<16x384xf32>
    %44 = arith.mulf %41, %43 : vector<16x384xf32>
    %c0_25 = arith.constant 0 : index
    %c0_26 = arith.constant 0 : index
    %45 = vector.load %arg4[%c0_25, %c0_26] : memref<1x384xf32, #tpu.memory_space<vmem>>, vector<1x384xf32>
    %46 = vector.broadcast %45 : vector<1x384xf32> to vector<16x384xf32>
    %47 = arith.addf %44, %46 : vector<16x384xf32>
    %cst_27 = arith.constant 0.000000e+00 : f32
    %48 = vector.broadcast %cst_27 : f32 to vector<16x384xf32>
    %49 = arith.maximumf %47, %48 : vector<16x384xf32>
    %50 = arith.truncf %49 : vector<16x384xf32> to vector<16x384xbf16>
    %c0_28 = arith.constant 0 : index
    %c0_29 = arith.constant 0 : index
    %51 = vector.load %arg5[%c0_28, %c0_29] : memref<16x384xbf16, #tpu.memory_space<vmem>>, vector<16x384xbf16>
    tpu.vector_store %arg5[%c0_28, %c0_29], %50 {strides = array<i32>} : memref<16x384xbf16, #tpu.memory_space<vmem>>, vector<16x384xbf16>,
    return
  }
  func.func @transform_0(%arg0: i32) -> (i32, i32, i32) {
    %c0_i32 = arith.constant 0 : i32
    %c0_i32_0 = arith.constant 0 : i32
    %c0_i32_1 = arith.constant 0 : i32
    return %arg0, %c0_i32, %c0_i32_0 : i32, i32, i32
  }
  func.func @transform_1(%arg0: i32) -> (i32, i32, i32) {
    %c0_i32 = arith.constant 0 : i32
    %c0_i32_0 = arith.constant 0 : i32
    %c0_i32_1 = arith.constant 0 : i32
    %c0_i32_2 = arith.constant 0 : i32
    return %c0_i32, %c0_i32_0, %c0_i32_1 : i32, i32, i32
  }
  func.func @transform_2(%arg0: i32) -> (i32, i32) {
    %c0_i32 = arith.constant 0 : i32
    %c0_i32_0 = arith.constant 0 : i32
    %c0_i32_1 = arith.constant 0 : i32
    return %c0_i32, %c0_i32_0 : i32, i32
  }
  func.func @transform_3(%arg0: i32) -> (i32, i32) {
    %c0_i32 = arith.constant 0 : i32
    %c0_i32_0 = arith.constant 0 : i32
    %c0_i32_1 = arith.constant 0 : i32
    return %c0_i32, %c0_i32_0 : i32, i32
  }
  func.func @transform_4(%arg0: i32) -> (i32, i32) {
    %c0_i32 = arith.constant 0 : i32
    %c0_i32_0 = arith.constant 0 : i32
    return %arg0, %c0_i32 : i32, i32
  }
}

</mosaic_0001>

<llo_original>
// kernel: multi_res_mlp.2
$region0: #{multi_res_mlp.2}
  #allocation0 [shape = 'u32[]', space=smem, size = 0x4, offset = 0x4, fixed_abs, tag = 'smem constant byte address 0x4 - core index']
  #allocation1 [shape = 'u32[72,128]{1,0:T(1,128)}', space=vmem, size = 0x9000, scoped, tag = 'internal scratch']
  %s0 = inlined_call_operand.vmem [shape: bf16[2,22,88], index: 0, kind: input, shape index: {}]
  %s1 = inlined_call_operand.vmem [shape: bf16[7,88,384], index: 1, kind: input, shape index: {}]
  %s2 = inlined_call_operand.vmem [shape: f32[16,384], index: 2, kind: output, shape index: {0}]
  %s3 = inlined_call_operand.vmem [shape: f32[16,384], index: 3, kind: output, shape index: {1}]
  %4 = xla_tuple %s2, %s3
  %s5 = sld [smem:[#allocation0]]
  $region49: #{multi_res_mlp.2} parent=0
    _
  %s7 = ssub.s32 1, %s5
  %s8 = scalar_select 0, %s7, %s5
  loop: start=0, step=1, limit=4
  $region2: #{multi_res_mlp.2} parent=0 // loop_pre_header
    _
  $region3: #{multi_res_mlp.2} parent=0 // loop_header
    %s10 = sphi 0, %s14
    %p11 = scmp.ge.s32.totalorder %s10, 4
    %s20 = sphi 0, %s22
    %s23 = sphi 0, %s20
    %s24 = sphi 0, %s23
    %s40 = sphi 0, %s24
    %s44 = sphi 0, %s44
    %s46 = sphi 0, %s44
    %s47 = sphi 0, %s46
    %s61 = sphi 0, %s47
    %s67 = sphi 0, %s69
    %s70 = sphi 0, %s67
    %s71 = sphi 0, %s70
    %s87 = sphi 0, %s71
    %s93 = sphi 0, %s95
    %s96 = sphi 0, %s93
    %s97 = sphi 0, %s96
    %s113 = sphi 0, %s97
  $region4: #{multi_res_mlp.2} parent=0 // loop_header_branch
    %13 = sbr.rel (%p11) target = $region8
  $region5: #{multi_res_mlp.2} parent=0 // loop_body
    %s15 = ssub.s32 %s10, 1
    %s16 = ssub.s32 %s10, 2
    %s17 = sadd.s32 %s10, 1
    %s18 = ssub.s32 %s10, %s17
    %p19 = scmp.eq.s32.totalorder %s18, 0
    %s21 = sadd.s32 %s20, 1
    %s22 = scalar_select %p19, %s20, %s21
    %p25 = pneg %p19
    %p26 = scmp.eq.s32.totalorder %s10, 1
    %p27 = por %p25, %p26
    %p28 = scmp.ne.s32.totalorder %s20, %s23
    %p29 = scmp.eq.s32.totalorder %s10, 0
    %p30 = por %p28, %p29
    %p31 = scmp.ne.s32.totalorder %s20, %s23
    %p32 = scmp.eq.s32.totalorder %s15, 1
    %p33 = por %p31, %p32
    %p34 = scmp.ne.s32.totalorder %s23, %s24
    %p35 = scmp.eq.s32.totalorder %s15, 0
    %p36 = por %p34, %p35
    %p37 = scmp.ne.s32.totalorder %s23, %s24
    %p38 = scmp.eq.s32.totalorder %s16, 1
    %p39 = por %p37, %p38
    %p41 = scmp.ne.s32.totalorder %s24, %s40
    %p42 = scmp.eq.s32.totalorder %s16, 0
    %p43 = por %p41, %p42
    %s45 = sadd.s32 %s44, 1
    %p48 = scmp.eq.s32.totalorder %s10, 1
    %p49 = scmp.ne.s32.totalorder %s44, %s46
    %p50 = scmp.eq.s32.totalorder %s10, 0
    %p51 = por %p49, %p50
    %p52 = scmp.ne.s32.totalorder %s44, %s46
    %p53 = scmp.eq.s32.totalorder %s15, 1
    %p54 = por %p52, %p53
    %p55 = scmp.ne.s32.totalorder %s46, %s47
    %p56 = scmp.eq.s32.totalorder %s15, 0
    %p57 = por %p55, %p56
    %p58 = scmp.ne.s32.totalorder %s46, %s47
    %p59 = scmp.eq.s32.totalorder %s16, 1
    %p60 = por %p58, %p59
    %p62 = scmp.ne.s32.totalorder %s47, %s61
    %p63 = scmp.eq.s32.totalorder %s16, 0
    %p64 = por %p62, %p63
    %s65 = ssub.s32 %s10, %s17
    %p66 = scmp.eq.s32.totalorder %s65, 0
    %s68 = sadd.s32 %s67, 1
    %s69 = scalar_select %p66, %s67, %s68
    %p72 = pneg %p66
    %p73 = scmp.eq.s32.totalorder %s10, 1
    %p74 = por %p72, %p73
    %p75 = scmp.ne.s32.totalorder %s67, %s70
    %p76 = scmp.eq.s32.totalorder %s10, 0
    %p77 = por %p75, %p76
    %p78 = scmp.ne.s32.totalorder %s67, %s70
    %p79 = scmp.eq.s32.totalorder %s15, 1
    %p80 = por %p78, %p79
    %p81 = scmp.ne.s32.totalorder %s70, %s71
    %p82 = scmp.eq.s32.totalorder %s15, 0
    %p83 = por %p81, %p82
    %p84 = scmp.ne.s32.totalorder %s70, %s71
    %p85 = scmp.eq.s32.totalorder %s16, 1
    %p86 = por %p84, %p85
    %p88 = scmp.ne.s32.totalorder %s71, %s87
    %p89 = scmp.eq.s32.totalorder %s16, 0
    %p90 = por %p88, %p89
    %s91 = ssub.s32 %s10, %s17
    %p92 = scmp.eq.s32.totalorder %s91, 0
    %s94 = sadd.s32 %s93, 1
    %s95 = scalar_select %p92, %s93, %s94
    %p98 = pneg %p92
    %p99 = scmp.eq.s32.totalorder %s10, 1
    %p100 = por %p98, %p99
    %p101 = scmp.ne.s32.totalorder %s93, %s96
    %p102 = scmp.eq.s32.totalorder %s10, 0
    %p103 = por %p101, %p102
    %p104 = scmp.ne.s32.totalorder %s93, %s96
    %p105 = scmp.eq.s32.totalorder %s15, 1
    %p106 = por %p104, %p105
    %p107 = scmp.ne.s32.totalorder %s96, %s97
    %p108 = scmp.eq.s32.totalorder %s15, 0
    %p109 = por %p107, %p108
    %p110 = scmp.ne.s32.totalorder %s96, %s97
    %p111 = scmp.eq.s32.totalorder %s16, 1
    %p112 = por %p110, %p111
    %p114 = scmp.ne.s32.totalorder %s97, %s113
    %p115 = scmp.eq.s32.totalorder %s16, 0
    %p116 = por %p114, %p115
    %p117 = scmp.le.s32.totalorder 1, %s10
    %p118 = scmp.lt.s32.totalorder %s10, 3
    %p119 = pnand %p117, %p118
    %p120 = pneg %p119
    // Predicated region
    $region9: #{multi_res_mlp.2} parent=5 // pred_check
      _
    $region10: #{multi_res_mlp.2} parent=5 // pred_check_branch
      %122 = sbr.rel (%p119) target = $region12
    $region11: #{multi_res_mlp.2} parent=5 // pred_region
      %s123 = ssub.s32 %s10, 1
      // Predicated region
      $region13: #{multi_res_mlp.2} parent=11 // pred_check
        %p124 = pneg %p57
      $region14: #{multi_res_mlp.2} parent=11 // pred_check_branch
        %126 = sbr.rel (%p124) target = $region16
      $region15: #{multi_res_mlp.2} parent=11 // pred_region
        _
      $region16: #{multi_res_mlp.2} parent=11 // pred_fallthru
        _
    $region12: #{multi_res_mlp.2} parent=5 // pred_fallthru
      _
    %p127 = scmp.lt.s32.totalorder %s10, 2
    // Predicated region
    $region17: #{multi_res_mlp.2} parent=5 // pred_check
      %p128 = pneg %p127
    $region18: #{multi_res_mlp.2} parent=5 // pred_check_branch
      %130 = sbr.rel (%p128) target = $region20
    $region19: #{multi_res_mlp.2} parent=5 // pred_region
      // Predicated region
      $region21: #{multi_res_mlp.2} parent=19 // pred_check
        %p131 = pneg %p30
      $region22: #{multi_res_mlp.2} parent=19 // pred_check_branch
        %133 = sbr.rel (%p131) target = $region24
      $region23: #{multi_res_mlp.2} parent=19 // pred_region
        %p134 = scmp.lt.s32.totalorder %s10, 1
        %s135 = scalar_select %p134, %s10, 1
        %s136 = smul.addr %s135, 3
        %s137 = smul.addr %s136, 4
        %s138 = scalar_lea.vmem %s0, %s137
      $region24: #{multi_res_mlp.2} parent=19 // pred_fallthru
        _
    $region20: #{multi_res_mlp.2} parent=5 // pred_fallthru
      _
    %p139 = scmp.le.s32.totalorder 1, %s10
    %p140 = scmp.lt.s32.totalorder %s10, 3
    %p141 = pnand %p139, %p140
    %p142 = pneg %p141
    // Predicated region
    $region25: #{multi_res_mlp.2} parent=5 // pred_check
      _
    $region26: #{multi_res_mlp.2} parent=5 // pred_check_branch
      %144 = sbr.rel (%p141) target = $region28
    $region27: #{multi_res_mlp.2} parent=5 // pred_region
      %s145 = ssub.s32 %s10, 1
      %p146 = scmp.lt.s32.totalorder %s15, 1
      %s147 = scalar_select %p146, %s15, 1
      %s148 = smul.addr %s147, 3
      %s149 = smul.addr %s148, 4
      %s150 = scalar_lea.vmem %s0, %s149
      %p151 = pneg %p36
      %p152 = pneg %p33
      %p153 = pneg %p57
      %p154 = pneg %p54
      %p155 = pneg %p83
      %p156 = pneg %p80
      %p157 = scmp.lt.s32.totalorder %s15, 1
      %s158 = scalar_select %p157, %s15, 1
      %s159 = smul.addr %s158, 3
      %s160 = smul.addr %s159, 8
      %s161 = scalar_lea.vmem %s2, %s160
      %p162 = pneg %p109
      %p163 = pneg %p106
      %p164 = scmp.lt.s32.totalorder %s15, 1
      %s165 = scalar_select %p164, %s15, 1
      %s166 = smul.addr %s165, 3
      %s167 = smul.addr %s166, 8
      %s168 = scalar_lea.vmem %s3, %s167
      %p169 = scmp.lt.s32.totalorder %s15, 1
      %s170 = scalar_select %p169, %s15, 1
      %s171 = smul.addr %s170, 3
      %s172 = smul.addr %s171, 4
      %s173 = scalar_lea.vmem %s0, %s172
      %p174 = scmp.lt.s32.totalorder %s15, 1
      %s175 = scalar_select %p174, %s15, 1
      %s176 = smul.addr %s175, 3
      %s177 = smul.addr %s176, 8
      %s178 = scalar_lea.vmem %s2, %s177
      %p179 = scmp.lt.s32.totalorder %s15, 1
      %s180 = scalar_select %p179, %s15, 1
      %s181 = smul.addr %s180, 3
      %s182 = smul.addr %s181, 8
      %s183 = scalar_lea.vmem %s3, %s182
      %v185 = vld [vmem:[%s173] sm:$0xf]
      %v186 = vld [vmem:[%s173 + $0x4] sm:$0xf]
      %v187 = vld [vmem:[%s173 + $0x8] sm:$0x7]
      %v188 = vld [vmem:[%s1] sm:$0xff]
      %v189 = vld [vmem:[%s1 + $0x8] sm:$0xf]
      %v190 = vld [vmem:[%s1 + $0xc] sm:$0xff]
      %v191 = vld [vmem:[%s1 + $0x14] sm:$0xf]
      %v192 = vld [vmem:[%s1 + $0x18] sm:$0xff]
      %v193 = vld [vmem:[%s1 + $0x20] sm:$0xf]
      %v194 = vld [vmem:[%s1 + $0x24] sm:$0xff]
      %v195 = vld [vmem:[%s1 + $0x2c] sm:$0xf]
      %v196 = vld [vmem:[%s1 + $0x30] sm:$0xff]
      %v197 = vld [vmem:[%s1 + $0x38] sm:$0xf]
      %v198 = vld [vmem:[%s1 + $0x3c] sm:$0xff]
      %v199 = vld [vmem:[%s1 + $0x44] sm:$0xf]
      %v200 = vld [vmem:[%s1 + $0x48] sm:$0xff]
      %v201 = vld [vmem:[%s1 + $0x50] sm:$0xf]
      %v202 = vld [vmem:[%s1 + $0x54] sm:$0xff]
      %v203 = vld [vmem:[%s1 + $0x5c] sm:$0xf]
      %v204 = vld [vmem:[%s1 + $0x60] sm:$0xff]
      %v205 = vld [vmem:[%s1 + $0x68] sm:$0xf]
      %v206 = vld [vmem:[%s1 + $0x6c] sm:$0xff]
      %v207 = vld [vmem:[%s1 + $0x74] sm:$0xf]
      %v208 = vld [vmem:[%s1 + $0x78] sm:$0xff]
      %v209 = vld [vmem:[%s1 + $0x80] sm:$0xf]
      %s210 = scalar_lea.vmem %s1, 132
      %v211 = vld [vmem:[%s210] sm:$0xff]
      %v212 = vld [vmem:[%s210 + $0x8] sm:$0xf]
      %v213 = vld [vmem:[%s210 + $0xc] sm:$0xff]
      %v214 = vld [vmem:[%s210 + $0x14] sm:$0xf]
      %v215 = vld [vmem:[%s210 + $0x18] sm:$0xff]
      %v216 = vld [vmem:[%s210 + $0x20] sm:$0xf]
      %v217 = vld [vmem:[%s210 + $0x24] sm:$0xff]
      %v218 = vld [vmem:[%s210 + $0x2c] sm:$0xf]
      %v219 = vld [vmem:[%s210 + $0x30] sm:$0xff]
      %v220 = vld [vmem:[%s210 + $0x38] sm:$0xf]
      %v221 = vld [vmem:[%s210 + $0x3c] sm:$0xff]
      %v222 = vld [vmem:[%s210 + $0x44] sm:$0xf]
      %v223 = vld [vmem:[%s210 + $0x48] sm:$0xff]
      %v224 = vld [vmem:[%s210 + $0x50] sm:$0xf]
      %v225 = vld [vmem:[%s210 + $0x54] sm:$0xff]
      %v226 = vld [vmem:[%s210 + $0x5c] sm:$0xf]
      %v227 = vld [vmem:[%s210 + $0x60] sm:$0xff]
      %v228 = vld [vmem:[%s210 + $0x68] sm:$0xf]
      %v229 = vld [vmem:[%s210 + $0x6c] sm:$0xff]
      %v230 = vld [vmem:[%s210 + $0x74] sm:$0xf]
      %v231 = vld [vmem:[%s210 + $0x78] sm:$0xff]
      %v232 = vld [vmem:[%s210 + $0x80] sm:$0xf]
      %v236 = vunpack.c.l.b16 %v185
      %v237 = vunpack.c.l.b16 %v186
      %v238 = vunpack.c.l.b16 %v187
      %v239 = vpack.c.b16 %v237, %v236
      %v240 = vpack.c.b16 %v238, %v238
      %vm241 = vsmask.f32 7424
      %v243 = vshrl.u32 %v239, 16
      %v245 = vshll.u32 %v239, 16
      %v247 = vrot.slane %v245, 1
      %v248 = vor.u32 %v243, %v247
      %v250 = vshll.u32 %v240, 16
      %v252 = vrot.slane %v250, 1
      %v253 = vsel %vm241, %v248, %v252
      %v276 = vunpack.c.l.b16 %v211
      %v277 = vunpack.c.h.b16 %v211
      %v278 = vunpack.c.l.b16 %v212
      %v279 = vunpack.c.l.b16 %v213
      %v280 = vunpack.c.h.b16 %v213
      %v281 = vunpack.c.l.b16 %v214
      %v282 = vunpack.c.l.b16 %v215
      %v283 = vunpack.c.h.b16 %v215
      %v284 = vunpack.c.l.b16 %v216
      %v285 = vunpack.c.l.b16 %v217
      %v286 = vunpack.c.h.b16 %v217
      %v287 = vunpack.c.l.b16 %v218
      %v288 = vunpack.c.l.b16 %v219
      %v289 = vunpack.c.h.b16 %v219
      %v290 = vunpack.c.l.b16 %v220
      %v291 = vunpack.c.l.b16 %v221
      %v292 = vunpack.c.h.b16 %v221
      %v293 = vunpack.c.l.b16 %v222
      %v294 = vunpack.c.l.b16 %v223
      %v295 = vunpack.c.h.b16 %v223
      %v296 = vunpack.c.l.b16 %v224
      %v297 = vunpack.c.l.b16 %v225
      %v298 = vunpack.c.h.b16 %v225
      %v299 = vunpack.c.l.b16 %v226
      %v300 = vunpack.c.l.b16 %v227
      %v301 = vunpack.c.h.b16 %v227
      %v302 = vunpack.c.l.b16 %v228
      %v303 = vunpack.c.l.b16 %v229
      %v304 = vunpack.c.h.b16 %v229
      %v305 = vunpack.c.l.b16 %v230
      %v306 = vunpack.c.l.b16 %v231
      %v307 = vunpack.c.h.b16 %v231
      %v308 = vunpack.c.l.b16 %v232
      %v309 = vpack.c.b16 %v279, %v276
      %v310 = vpack.c.b16 %v280, %v277
      %v311 = vpack.c.b16 %v281, %v278
      %v312 = vpack.c.b16 %v285, %v282
      %v313 = vpack.c.b16 %v286, %v283
      %v314 = vpack.c.b16 %v287, %v284
      %v315 = vpack.c.b16 %v291, %v288
      %v316 = vpack.c.b16 %v292, %v289
      %v317 = vpack.c.b16 %v293, %v290
      %v318 = vpack.c.b16 %v297, %v294
      %v319 = vpack.c.b16 %v298, %v295
      %v320 = vpack.c.b16 %v299, %v296
      %v321 = vpack.c.b16 %v303, %v300
      %v322 = vpack.c.b16 %v304, %v301
      %v323 = vpack.c.b16 %v305, %v302
      %v324 = vpack.c.b16 %v306, %v306
      %v325 = vpack.c.b16 %v307, %v307
      %v326 = vpack.c.b16 %v308, %v308
      %vm342 = vcmask 719872
      %v344 = vsel %vm342, %v253, 0
      %vm346 = vcmask 1043456
      %v348 = vsel %vm346, %v324, 0
      %v351 = vsel %vm346, %v325, 0
      %v354 = vsel %vm346, %v326, 0
      %356 = vmatpush.bf16.msra.mxu0 0
      %357 = vmatpush.bf16.msra.mxu0 0
      %358 = vmatpush.bf16.msra.mxu0 %v348
      %359 = vmatpush.bf16.msra.mxu0 %v321
      %360 = vmatpush.bf16.msra.mxu0 %v318
      %361 = vmatpush.bf16.msra.mxu0 %v315
      %362 = vmatpush.bf16.msra.mxu0 %v312
      %363 = vmatpush.bf16.msra.mxu0 %v309
      %364 = vmatmul.bf16.gmra.mxu0 %v344
      %v365 = vpop.f32.mrf.mxu0
      %v366 = vadd.f32 0.0, %v365
      %v367 = vpop.f32.mrf.mxu0
      %v368 = vadd.f32 0.0, %v367
      %369 = vdwg.mxu0
      %370 = vmatpush.bf16.msra.mxu0 0
      %371 = vmatpush.bf16.msra.mxu0 0
      %372 = vmatpush.bf16.msra.mxu0 %v351
      %373 = vmatpush.bf16.msra.mxu0 %v322
      %374 = vmatpush.bf16.msra.mxu0 %v319
      %375 = vmatpush.bf16.msra.mxu0 %v316
      %376 = vmatpush.bf16.msra.mxu0 %v313
      %377 = vmatpush.bf16.msra.mxu0 %v310
      %378 = vmatmul.bf16.gmra.mxu0 %v344
      %v379 = vpop.f32.mrf.mxu0
      %v380 = vadd.f32 0.0, %v379
      %v381 = vpop.f32.mrf.mxu0
      %v382 = vadd.f32 0.0, %v381
      %383 = vdwg.mxu0
      %384 = vmatpush.bf16.msra.mxu0 0
      %385 = vmatpush.bf16.msra.mxu0 0
      %386 = vmatpush.bf16.msra.mxu0 %v354
      %387 = vmatpush.bf16.msra.mxu0 %v323
      %388 = vmatpush.bf16.msra.mxu0 %v320
      %389 = vmatpush.bf16.msra.mxu0 %v317
      %390 = vmatpush.bf16.msra.mxu0 %v314
      %391 = vmatpush.bf16.msra.mxu0 %v311
      %392 = vmatmul.bf16.gmra.mxu0 %v344
      %v393 = vpop.f32.mrf.mxu0
      %v394 = vadd.f32 0.0, %v393
      %v395 = vpop.f32.mrf.mxu0
      %v396 = vadd.f32 0.0, %v395
      %397 = vdwg.mxu0
      %v420 = vunpack.c.l.b16 %v188
      %v421 = vunpack.c.h.b16 %v188
      %v422 = vunpack.c.l.b16 %v189
      %v423 = vunpack.c.l.b16 %v190
      %v424 = vunpack.c.h.b16 %v190
      %v425 = vunpack.c.l.b16 %v191
      %v426 = vunpack.c.l.b16 %v192
      %v427 = vunpack.c.h.b16 %v192
      %v428 = vunpack.c.l.b16 %v193
      %v429 = vunpack.c.l.b16 %v194
      %v430 = vunpack.c.h.b16 %v194
      %v431 = vunpack.c.l.b16 %v195
      %v432 = vunpack.c.l.b16 %v196
      %v433 = vunpack.c.h.b16 %v196
      %v434 = vunpack.c.l.b16 %v197
      %v435 = vunpack.c.l.b16 %v198
      %v436 = vunpack.c.h.b16 %v198
      %v437 = vunpack.c.l.b16 %v199
      %v438 = vunpack.c.l.b16 %v200
      %v439 = vunpack.c.h.b16 %v200
      %v440 = vunpack.c.l.b16 %v201
      %v441 = vunpack.c.l.b16 %v202
      %v442 = vunpack.c.h.b16 %v202
      %v443 = vunpack.c.l.b16 %v203
      %v444 = vunpack.c.l.b16 %v204
      %v445 = vunpack.c.h.b16 %v204
      %v446 = vunpack.c.l.b16 %v205
      %v447 = vunpack.c.l.b16 %v206
      %v448 = vunpack.c.h.b16 %v206
      %v449 = vunpack.c.l.b16 %v207
      %v450 = vunpack.c.l.b16 %v208
      %v451 = vunpack.c.h.b16 %v208
      %v452 = vunpack.c.l.b16 %v209
      %v453 = vpack.c.b16 %v423, %v420
      %v454 = vpack.c.b16 %v424, %v421
      %v455 = vpack.c.b16 %v425, %v422
      %v456 = vpack.c.b16 %v429, %v426
      %v457 = vpack.c.b16 %v430, %v427
      %v458 = vpack.c.b16 %v431, %v428
      %v459 = vpack.c.b16 %v435, %v432
      %v460 = vpack.c.b16 %v436, %v433
      %v461 = vpack.c.b16 %v437, %v434
      %v462 = vpack.c.b16 %v441, %v438
      %v463 = vpack.c.b16 %v442, %v439
      %v464 = vpack.c.b16 %v443, %v440
      %v465 = vpack.c.b16 %v447, %v444
      %v466 = vpack.c.b16 %v448, %v445
      %v467 = vpack.c.b16 %v449, %v446
      %v468 = vpack.c.b16 %v450, %v450
      %v469 = vpack.c.b16 %v451, %v451
      %v470 = vpack.c.b16 %v452, %v452
      %v486 = vsel %vm342, %v239, 0
      %v489 = vsel %vm346, %v468, 0
      %v492 = vsel %vm346, %v469, 0
      %v495 = vsel %vm346, %v470, 0
      %497 = vmatpush.bf16.msra.mxu0 0
      %498 = vmatpush.bf16.msra.mxu0 0
      %499 = vmatpush.bf16.msra.mxu0 %v489
      %500 = vmatpush.bf16.msra.mxu0 %v465
      %501 = vmatpush.bf16.msra.mxu0 %v462
      %502 = vmatpush.bf16.msra.mxu0 %v459
      %503 = vmatpush.bf16.msra.mxu0 %v456
      %504 = vmatpush.bf16.msra.mxu0 %v453
      %505 = vmatmul.bf16.gmra.mxu0 %v486
      %v506 = vpop.f32.mrf.mxu0
      %v507 = vadd.f32 %v366, %v506
      %v508 = vpop.f32.mrf.mxu0
      %v509 = vadd.f32 %v368, %v508
      %510 = vdwg.mxu0
      %511 = vmatpush.bf16.msra.mxu0 0
      %512 = vmatpush.bf16.msra.mxu0 0
      %513 = vmatpush.bf16.msra.mxu0 %v492
      %514 = vmatpush.bf16.msra.mxu0 %v466
      %515 = vmatpush.bf16.msra.mxu0 %v463
      %516 = vmatpush.bf16.msra.mxu0 %v460
      %517 = vmatpush.bf16.msra.mxu0 %v457
      %518 = vmatpush.bf16.msra.mxu0 %v454
      %519 = vmatmul.bf16.gmra.mxu0 %v486
      %v520 = vpop.f32.mrf.mxu0
      %v521 = vadd.f32 %v380, %v520
      %v522 = vpop.f32.mrf.mxu0
      %v523 = vadd.f32 %v382, %v522
      %524 = vdwg.mxu0
      %525 = vmatpush.bf16.msra.mxu0 0
      %526 = vmatpush.bf16.msra.mxu0 0
      %527 = vmatpush.bf16.msra.mxu0 %v495
      %528 = vmatpush.bf16.msra.mxu0 %v467
      %529 = vmatpush.bf16.msra.mxu0 %v464
      %530 = vmatpush.bf16.msra.mxu0 %v461
      %531 = vmatpush.bf16.msra.mxu0 %v458
      %532 = vmatpush.bf16.msra.mxu0 %v455
      %533 = vmatmul.bf16.gmra.mxu0 %v486
      %v534 = vpop.f32.mrf.mxu0
      %v535 = vadd.f32 %v394, %v534
      %v536 = vpop.f32.mrf.mxu0
      %v537 = vadd.f32 %v396, %v536
      %538 = vdwg.mxu0
      %s539 = scalar_lea.vmem %s1, 264
      %v540 = vld [vmem:[%s539] sm:$0xff]
      %v541 = vld [vmem:[%s539 + $0x8] sm:$0xf]
      %v542 = vld [vmem:[%s539 + $0xc] sm:$0xff]
      %v543 = vld [vmem:[%s539 + $0x14] sm:$0xf]
      %v544 = vld [vmem:[%s539 + $0x18] sm:$0xff]
      %v545 = vld [vmem:[%s539 + $0x20] sm:$0xf]
      %v546 = vld [vmem:[%s539 + $0x24] sm:$0xff]
      %v547 = vld [vmem:[%s539 + $0x2c] sm:$0xf]
      %v548 = vld [vmem:[%s539 + $0x30] sm:$0xff]
      %v549 = vld [vmem:[%s539 + $0x38] sm:$0xf]
      %v550 = vld [vmem:[%s539 + $0x3c] sm:$0xff]
      %v551 = vld [vmem:[%s539 + $0x44] sm:$0xf]
      %v552 = vld [vmem:[%s539 + $0x48] sm:$0xff]
      %v553 = vld [vmem:[%s539 + $0x50] sm:$0xf]
      %v554 = vld [vmem:[%s539 + $0x54] sm:$0xff]
      %v555 = vld [vmem:[%s539 + $0x5c] sm:$0xf]
      %v556 = vld [vmem:[%s539 + $0x60] sm:$0xff]
      %v557 = vld [vmem:[%s539 + $0x68] sm:$0xf]
      %v558 = vld [vmem:[%s539 + $0x6c] sm:$0xff]
      %v559 = vld [vmem:[%s539 + $0x74] sm:$0xf]
      %v560 = vld [vmem:[%s539 + $0x78] sm:$0xff]
      %v561 = vld [vmem:[%s539 + $0x80] sm:$0xf]
      %vm562 = vcmask 1046528
      %v563 = vrot.slane %v239, 1
      %v564 = vrot.slane %v240, 1
      %v565 = vsel %vm562, %v563, %v564
      %v588 = vunpack.c.l.b16 %v540
      %v589 = vunpack.c.h.b16 %v540
      %v590 = vunpack.c.l.b16 %v541
      %v591 = vunpack.c.l.b16 %v542
      %v592 = vunpack.c.h.b16 %v542
      %v593 = vunpack.c.l.b16 %v543
      %v594 = vunpack.c.l.b16 %v544
      %v595 = vunpack.c.h.b16 %v544
      %v596 = vunpack.c.l.b16 %v545
      %v597 = vunpack.c.l.b16 %v546
      %v598 = vunpack.c.h.b16 %v546
      %v599 = vunpack.c.l.b16 %v547
      %v600 = vunpack.c.l.b16 %v548
      %v601 = vunpack.c.h.b16 %v548
      %v602 = vunpack.c.l.b16 %v549
      %v603 = vunpack.c.l.b16 %v550
      %v604 = vunpack.c.h.b16 %v550
      %v605 = vunpack.c.l.b16 %v551
      %v606 = vunpack.c.l.b16 %v552
      %v607 = vunpack.c.h.b16 %v552
      %v608 = vunpack.c.l.b16 %v553
      %v609 = vunpack.c.l.b16 %v554
      %v610 = vunpack.c.h.b16 %v554
      %v611 = vunpack.c.l.b16 %v555
      %v612 = vunpack.c.l.b16 %v556
      %v613 = vunpack.c.h.b16 %v556
      %v614 = vunpack.c.l.b16 %v557
      %v615 = vunpack.c.l.b16 %v558
      %v616 = vunpack.c.h.b16 %v558
      %v617 = vunpack.c.l.b16 %v559
      %v618 = vunpack.c.l.b16 %v560
      %v619 = vunpack.c.h.b16 %v560
      %v620 = vunpack.c.l.b16 %v561
      %v621 = vpack.c.b16 %v591, %v588
      %v622 = vpack.c.b16 %v592, %v589
      %v623 = vpack.c.b16 %v593, %v590
      %v624 = vpack.c.b16 %v597, %v594
      %v625 = vpack.c.b16 %v598, %v595
      %v626 = vpack.c.b16 %v599, %v596
      %v627 = vpack.c.b16 %v603, %v600
      %v628 = vpack.c.b16 %v604, %v601
      %v629 = vpack.c.b16 %v605, %v602
      %v630 = vpack.c.b16 %v609, %v606
      %v631 = vpack.c.b16 %v610, %v607
      %v632 = vpack.c.b16 %v611, %v608
      %v633 = vpack.c.b16 %v615, %v612
      %v634 = vpack.c.b16 %v616, %v613
      %v635 = vpack.c.b16 %v617, %v614
      %v636 = vpack.c.b16 %v618, %v618
      %v637 = vpack.c.b16 %v619, %v619
      %v638 = vpack.c.b16 %v620, %v620
      %v655 = vsel %vm342, %v565, 0
      %v658 = vsel %vm346, %v636, 0
      %v661 = vsel %vm346, %v637, 0
      %v664 = vsel %vm346, %v638, 0
      %666 = vmatpush.bf16.msra.mxu0 0
      %667 = vmatpush.bf16.msra.mxu0 0
      %668 = vmatpush.bf16.msra.mxu0 %v658
      %669 = vmatpush.bf16.msra.mxu0 %v633
      %670 = vmatpush.bf16.msra.mxu0 %v630
      %671 = vmatpush.bf16.msra.mxu0 %v627
      %672 = vmatpush.bf16.msra.mxu0 %v624
      %673 = vmatpush.bf16.msra.mxu0 %v621
      %674 = vmatmul.bf16.gmra.mxu0 %v655
      %v675 = vpop.f32.mrf.mxu0
      %v676 = vadd.f32 0.0, %v675
      %v677 = vpop.f32.mrf.mxu0
      %v678 = vadd.f32 0.0, %v677
      %679 = vdwg.mxu0
      %680 = vmatpush.bf16.msra.mxu0 0
      %681 = vmatpush.bf16.msra.mxu0 0
      %682 = vmatpush.bf16.msra.mxu0 %v661
      %683 = vmatpush.bf16.msra.mxu0 %v634
      %684 = vmatpush.bf16.msra.mxu0 %v631
      %685 = vmatpush.bf16.msra.mxu0 %v628
      %686 = vmatpush.bf16.msra.mxu0 %v625
      %687 = vmatpush.bf16.msra.mxu0 %v622
      %688 = vmatmul.bf16.gmra.mxu0 %v655
      %v689 = vpop.f32.mrf.mxu0
      %v690 = vadd.f32 0.0, %v689
      %v691 = vpop.f32.mrf.mxu0
      %v692 = vadd.f32 0.0, %v691
      %693 = vdwg.mxu0
      %694 = vmatpush.bf16.msra.mxu0 0
      %695 = vmatpush.bf16.msra.mxu0 0
      %696 = vmatpush.bf16.msra.mxu0 %v664
      %697 = vmatpush.bf16.msra.mxu0 %v635
      %698 = vmatpush.bf16.msra.mxu0 %v632
      %699 = vmatpush.bf16.msra.mxu0 %v629
      %700 = vmatpush.bf16.msra.mxu0 %v626
      %701 = vmatpush.bf16.msra.mxu0 %v623
      %702 = vmatmul.bf16.gmra.mxu0 %v655
      %v703 = vpop.f32.mrf.mxu0
      %v704 = vadd.f32 0.0, %v703
      %v705 = vpop.f32.mrf.mxu0
      %v706 = vadd.f32 0.0, %v705
      %707 = vdwg.mxu0
      %v708 = vadd.f32 %v507, %v676
      %v709 = vadd.f32 %v521, %v690
      %v710 = vadd.f32 %v535, %v704
      %v711 = vadd.f32 %v509, %v678
      %v712 = vadd.f32 %v523, %v692
      %v713 = vadd.f32 %v537, %v706
      %s714 = scalar_lea.vmem %s1, 396
      %v715 = vld [vmem:[%s714] sm:$0xff]
      %v716 = vld [vmem:[%s714 + $0x8] sm:$0xf]
      %v717 = vld [vmem:[%s714 + $0xc] sm:$0xff]
      %v718 = vld [vmem:[%s714 + $0x14] sm:$0xf]
      %v719 = vld [vmem:[%s714 + $0x18] sm:$0xff]
      %v720 = vld [vmem:[%s714 + $0x20] sm:$0xf]
      %v721 = vld [vmem:[%s714 + $0x24] sm:$0xff]
      %v722 = vld [vmem:[%s714 + $0x2c] sm:$0xf]
      %v723 = vld [vmem:[%s714 + $0x30] sm:$0xff]
      %v724 = vld [vmem:[%s714 + $0x38] sm:$0xf]
      %v725 = vld [vmem:[%s714 + $0x3c] sm:$0xff]
      %v726 = vld [vmem:[%s714 + $0x44] sm:$0xf]
      %v727 = vld [vmem:[%s714 + $0x48] sm:$0xff]
      %v728 = vld [vmem:[%s714 + $0x50] sm:$0xf]
      %v729 = vld [vmem:[%s714 + $0x54] sm:$0xff]
      %v730 = vld [vmem:[%s714 + $0x5c] sm:$0xf]
      %v731 = vld [vmem:[%s714 + $0x60] sm:$0xff]
      %v732 = vld [vmem:[%s714 + $0x68] sm:$0xf]
      %v733 = vld [vmem:[%s714 + $0x6c] sm:$0xff]
      %v734 = vld [vmem:[%s714 + $0x74] sm:$0xf]
      %v735 = vld [vmem:[%s714 + $0x78] sm:$0xff]
      %v736 = vld [vmem:[%s714 + $0x80] sm:$0xf]
      %vm737 = vsmask.f32 6400
      %v738 = vrot.slane %v243, 1
      %v739 = vrot.slane %v245, 2
      %v740 = vor.u32 %v738, %v739
      %v741 = vshrl.u32 %v240, 16
      %v743 = vrot.slane %v741, 1
      %v744 = vrot.slane %v250, 2
      %v745 = vor.u32 %v743, %v744
      %v746 = vsel %vm737, %v740, %v745
      %v769 = vunpack.c.l.b16 %v715
      %v770 = vunpack.c.h.b16 %v715
      %v771 = vunpack.c.l.b16 %v716
      %v772 = vunpack.c.l.b16 %v717
      %v773 = vunpack.c.h.b16 %v717
      %v774 = vunpack.c.l.b16 %v718
      %v775 = vunpack.c.l.b16 %v719
      %v776 = vunpack.c.h.b16 %v719
      %v777 = vunpack.c.l.b16 %v720
      %v778 = vunpack.c.l.b16 %v721
      %v779 = vunpack.c.h.b16 %v721
      %v780 = vunpack.c.l.b16 %v722
      %v781 = vunpack.c.l.b16 %v723
      %v782 = vunpack.c.h.b16 %v723
      %v783 = vunpack.c.l.b16 %v724
      %v784 = vunpack.c.l.b16 %v725
      %v785 = vunpack.c.h.b16 %v725
      %v786 = vunpack.c.l.b16 %v726
      %v787 = vunpack.c.l.b16 %v727
      %v788 = vunpack.c.h.b16 %v727
      %v789 = vunpack.c.l.b16 %v728
      %v790 = vunpack.c.l.b16 %v729
      %v791 = vunpack.c.h.b16 %v729
      %v792 = vunpack.c.l.b16 %v730
      %v793 = vunpack.c.l.b16 %v731
      %v794 = vunpack.c.h.b16 %v731
      %v795 = vunpack.c.l.b16 %v732
      %v796 = vunpack.c.l.b16 %v733
      %v797 = vunpack.c.h.b16 %v733
      %v798 = vunpack.c.l.b16 %v734
      %v799 = vunpack.c.l.b16 %v735
      %v800 = vunpack.c.h.b16 %v735
      %v801 = vunpack.c.l.b16 %v736
      %v802 = vpack.c.b16 %v772, %v769
      %v803 = vpack.c.b16 %v773, %v770
      %v804 = vpack.c.b16 %v774, %v771
      %v805 = vpack.c.b16 %v778, %v775
      %v806 = vpack.c.b16 %v779, %v776
      %v807 = vpack.c.b16 %v780, %v777
      %v808 = vpack.c.b16 %v784, %v781
      %v809 = vpack.c.b16 %v785, %v782
      %v810 = vpack.c.b16 %v786, %v783
      %v811 = vpack.c.b16 %v790, %v787
      %v812 = vpack.c.b16 %v791, %v788
      %v813 = vpack.c.b16 %v792, %v789
      %v814 = vpack.c.b16 %v796, %v793
      %v815 = vpack.c.b16 %v797, %v794
      %v816 = vpack.c.b16 %v798, %v795
      %v817 = vpack.c.b16 %v799, %v799
      %v818 = vpack.c.b16 %v800, %v800
      %v819 = vpack.c.b16 %v801, %v801
      %v836 = vsel %vm342, %v746, 0
      %v839 = vsel %vm346, %v817, 0
      %v842 = vsel %vm346, %v818, 0
      %v845 = vsel %vm346, %v819, 0
      %847 = vmatpush.bf16.msra.mxu0 0
      %848 = vmatpush.bf16.msra.mxu0 0
      %849 = vmatpush.bf16.msra.mxu0 %v839
      %850 = vmatpush.bf16.msra.mxu0 %v814
      %851 = vmatpush.bf16.msra.mxu0 %v811
      %852 = vmatpush.bf16.msra.mxu0 %v808
      %853 = vmatpush.bf16.msra.mxu0 %v805
      %854 = vmatpush.bf16.msra.mxu0 %v802
      %855 = vmatmul.bf16.gmra.mxu0 %v836
      %v856 = vpop.f32.mrf.mxu0
      %v857 = vadd.f32 0.0, %v856
      %v858 = vpop.f32.mrf.mxu0
      %v859 = vadd.f32 0.0, %v858
      %860 = vdwg.mxu0
      %861 = vmatpush.bf16.msra.mxu0 0
      %862 = vmatpush.bf16.msra.mxu0 0
      %863 = vmatpush.bf16.msra.mxu0 %v842
      %864 = vmatpush.bf16.msra.mxu0 %v815
      %865 = vmatpush.bf16.msra.mxu0 %v812
      %866 = vmatpush.bf16.msra.mxu0 %v809
      %867 = vmatpush.bf16.msra.mxu0 %v806
      %868 = vmatpush.bf16.msra.mxu0 %v803
      %869 = vmatmul.bf16.gmra.mxu0 %v836
      %v870 = vpop.f32.mrf.mxu0
      %v871 = vadd.f32 0.0, %v870
      %v872 = vpop.f32.mrf.mxu0
      %v873 = vadd.f32 0.0, %v872
      %874 = vdwg.mxu0
      %875 = vmatpush.bf16.msra.mxu0 0
      %876 = vmatpush.bf16.msra.mxu0 0
      %877 = vmatpush.bf16.msra.mxu0 %v845
      %878 = vmatpush.bf16.msra.mxu0 %v816
      %879 = vmatpush.bf16.msra.mxu0 %v813
      %880 = vmatpush.bf16.msra.mxu0 %v810
      %881 = vmatpush.bf16.msra.mxu0 %v807
      %882 = vmatpush.bf16.msra.mxu0 %v804
      %883 = vmatmul.bf16.gmra.mxu0 %v836
      %v884 = vpop.f32.mrf.mxu0
      %v885 = vadd.f32 0.0, %v884
      %v886 = vpop.f32.mrf.mxu0
      %v887 = vadd.f32 0.0, %v886
      %888 = vdwg.mxu0
      %v889 = vadd.f32 %v708, %v857
      %v890 = vadd.f32 %v709, %v871
      %v891 = vadd.f32 %v710, %v885
      %v892 = vadd.f32 %v711, %v859
      %v893 = vadd.f32 %v712, %v873
      %v894 = vadd.f32 %v713, %v887
      %s895 = scalar_lea.vmem %s1, 528
      %v896 = vld [vmem:[%s895] sm:$0xff]
      %v897 = vld [vmem:[%s895 + $0x8] sm:$0xf]
      %v898 = vld [vmem:[%s895 + $0xc] sm:$0xff]
      %v899 = vld [vmem:[%s895 + $0x14] sm:$0xf]
      %v900 = vld [vmem:[%s895 + $0x18] sm:$0xff]
      %v901 = vld [vmem:[%s895 + $0x20] sm:$0xf]
      %v902 = vld [vmem:[%s895 + $0x24] sm:$0xff]
      %v903 = vld [vmem:[%s895 + $0x2c] sm:$0xf]
      %v904 = vld [vmem:[%s895 + $0x30] sm:$0xff]
      %v905 = vld [vmem:[%s895 + $0x38] sm:$0xf]
      %v906 = vld [vmem:[%s895 + $0x3c] sm:$0xff]
      %v907 = vld [vmem:[%s895 + $0x44] sm:$0xf]
      %v908 = vld [vmem:[%s895 + $0x48] sm:$0xff]
      %v909 = vld [vmem:[%s895 + $0x50] sm:$0xf]
      %v910 = vld [vmem:[%s895 + $0x54] sm:$0xff]
      %v911 = vld [vmem:[%s895 + $0x5c] sm:$0xf]
      %v912 = vld [vmem:[%s895 + $0x60] sm:$0xff]
      %v913 = vld [vmem:[%s895 + $0x68] sm:$0xf]
      %v914 = vld [vmem:[%s895 + $0x6c] sm:$0xff]
      %v915 = vld [vmem:[%s895 + $0x74] sm:$0xf]
      %v916 = vld [vmem:[%s895 + $0x78] sm:$0xff]
      %v917 = vld [vmem:[%s895 + $0x80] sm:$0xf]
      %vm918 = vcmask 1045504
      %v919 = vrot.slane %v239, 2
      %v920 = vrot.slane %v240, 2
      %v921 = vsel %vm918, %v919, %v920
      %v944 = vunpack.c.l.b16 %v896
      %v945 = vunpack.c.h.b16 %v896
      %v946 = vunpack.c.l.b16 %v897
      %v947 = vunpack.c.l.b16 %v898
      %v948 = vunpack.c.h.b16 %v898
      %v949 = vunpack.c.l.b16 %v899
      %v950 = vunpack.c.l.b16 %v900
      %v951 = vunpack.c.h.b16 %v900
      %v952 = vunpack.c.l.b16 %v901
      %v953 = vunpack.c.l.b16 %v902
      %v954 = vunpack.c.h.b16 %v902
      %v955 = vunpack.c.l.b16 %v903
      %v956 = vunpack.c.l.b16 %v904
      %v957 = vunpack.c.h.b16 %v904
      %v958 = vunpack.c.l.b16 %v905
      %v959 = vunpack.c.l.b16 %v906
      %v960 = vunpack.c.h.b16 %v906
      %v961 = vunpack.c.l.b16 %v907
      %v962 = vunpack.c.l.b16 %v908
      %v963 = vunpack.c.h.b16 %v908
      %v964 = vunpack.c.l.b16 %v909
      %v965 = vunpack.c.l.b16 %v910
      %v966 = vunpack.c.h.b16 %v910
      %v967 = vunpack.c.l.b16 %v911
      %v968 = vunpack.c.l.b16 %v912
      %v969 = vunpack.c.h.b16 %v912
      %v970 = vunpack.c.l.b16 %v913
      %v971 = vunpack.c.l.b16 %v914
      %v972 = vunpack.c.h.b16 %v914
      %v973 = vunpack.c.l.b16 %v915
      %v974 = vunpack.c.l.b16 %v916
      %v975 = vunpack.c.h.b16 %v916
      %v976 = vunpack.c.l.b16 %v917
      %v977 = vpack.c.b16 %v947, %v944
      %v978 = vpack.c.b16 %v948, %v945
      %v979 = vpack.c.b16 %v949, %v946
      %v980 = vpack.c.b16 %v953, %v950
      %v981 = vpack.c.b16 %v954, %v951
      %v982 = vpack.c.b16 %v955, %v952
      %v983 = vpack.c.b16 %v959, %v956
      %v984 = vpack.c.b16 %v960, %v957
      %v985 = vpack.c.b16 %v961, %v958
      %v986 = vpack.c.b16 %v965, %v962
      %v987 = vpack.c.b16 %v966, %v963
      %v988 = vpack.c.b16 %v967, %v964
      %v989 = vpack.c.b16 %v971, %v968
      %v990 = vpack.c.b16 %v972, %v969
      %v991 = vpack.c.b16 %v973, %v970
      %v992 = vpack.c.b16 %v974, %v974
      %v993 = vpack.c.b16 %v975, %v975
      %v994 = vpack.c.b16 %v976, %v976
      %v1011 = vsel %vm342, %v921, 0
      %v1014 = vsel %vm346, %v992, 0
      %v1017 = vsel %vm346, %v993, 0
      %v1020 = vsel %vm346, %v994, 0
      %1022 = vmatpush.bf16.msra.mxu0 0
      %1023 = vmatpush.bf16.msra.mxu0 0
      %1024 = vmatpush.bf16.msra.mxu0 %v1014
      %1025 = vmatpush.bf16.msra.mxu0 %v989
      %1026 = vmatpush.bf16.msra.mxu0 %v986
      %1027 = vmatpush.bf16.msra.mxu0 %v983
      %1028 = vmatpush.bf16.msra.mxu0 %v980
      %1029 = vmatpush.bf16.msra.mxu0 %v977
      %1030 = vmatmul.bf16.gmra.mxu0 %v1011
      %v1031 = vpop.f32.mrf.mxu0
      %v1032 = vadd.f32 0.0, %v1031
      %v1033 = vpop.f32.mrf.mxu0
      %v1034 = vadd.f32 0.0, %v1033
      %1035 = vdwg.mxu0
      %1036 = vmatpush.bf16.msra.mxu0 0
      %1037 = vmatpush.bf16.msra.mxu0 0
      %1038 = vmatpush.bf16.msra.mxu0 %v1017
      %1039 = vmatpush.bf16.msra.mxu0 %v990
      %1040 = vmatpush.bf16.msra.mxu0 %v987
      %1041 = vmatpush.bf16.msra.mxu0 %v984
      %1042 = vmatpush.bf16.msra.mxu0 %v981
      %1043 = vmatpush.bf16.msra.mxu0 %v978
      %1044 = vmatmul.bf16.gmra.mxu0 %v1011
      %v1045 = vpop.f32.mrf.mxu0
      %v1046 = vadd.f32 0.0, %v1045
      %v1047 = vpop.f32.mrf.mxu0
      %v1048 = vadd.f32 0.0, %v1047
      %1049 = vdwg.mxu0
      %1050 = vmatpush.bf16.msra.mxu0 0
      %1051 = vmatpush.bf16.msra.mxu0 0
      %1052 = vmatpush.bf16.msra.mxu0 %v1020
      %1053 = vmatpush.bf16.msra.mxu0 %v991
      %1054 = vmatpush.bf16.msra.mxu0 %v988
      %1055 = vmatpush.bf16.msra.mxu0 %v985
      %1056 = vmatpush.bf16.msra.mxu0 %v982
      %1057 = vmatpush.bf16.msra.mxu0 %v979
      %1058 = vmatmul.bf16.gmra.mxu0 %v1011
      %v1059 = vpop.f32.mrf.mxu0
      %v1060 = vadd.f32 0.0, %v1059
      %v1061 = vpop.f32.mrf.mxu0
      %v1062 = vadd.f32 0.0, %v1061
      %1063 = vdwg.mxu0
      %v1064 = vadd.f32 %v889, %v1032
      %v1065 = vadd.f32 %v890, %v1046
      %v1066 = vadd.f32 %v891, %v1060
      %v1067 = vadd.f32 %v892, %v1034
      %v1068 = vadd.f32 %v893, %v1048
      %v1069 = vadd.f32 %v894, %v1062
      %s1070 = scalar_lea.vmem %s1, 660
      %v1071 = vld [vmem:[%s1070] sm:$0xff]
      %v1072 = vld [vmem:[%s1070 + $0x8] sm:$0xf]
      %v1073 = vld [vmem:[%s1070 + $0xc] sm:$0xff]
      %v1074 = vld [vmem:[%s1070 + $0x14] sm:$0xf]
      %v1075 = vld [vmem:[%s1070 + $0x18] sm:$0xff]
      %v1076 = vld [vmem:[%s1070 + $0x20] sm:$0xf]
      %v1077 = vld [vmem:[%s1070 + $0x24] sm:$0xff]
      %v1078 = vld [vmem:[%s1070 + $0x2c] sm:$0xf]
      %v1079 = vld [vmem:[%s1070 + $0x30] sm:$0xff]
      %v1080 = vld [vmem:[%s1070 + $0x38] sm:$0xf]
      %v1081 = vld [vmem:[%s1070 + $0x3c] sm:$0xff]
      %v1082 = vld [vmem:[%s1070 + $0x44] sm:$0xf]
      %v1083 = vld [vmem:[%s1070 + $0x48] sm:$0xff]
      %v1084 = vld [vmem:[%s1070 + $0x50] sm:$0xf]
      %v1085 = vld [vmem:[%s1070 + $0x54] sm:$0xff]
      %v1086 = vld [vmem:[%s1070 + $0x5c] sm:$0xf]
      %v1087 = vld [vmem:[%s1070 + $0x60] sm:$0xff]
      %v1088 = vld [vmem:[%s1070 + $0x68] sm:$0xf]
      %v1089 = vld [vmem:[%s1070 + $0x6c] sm:$0xff]
      %v1090 = vld [vmem:[%s1070 + $0x74] sm:$0xf]
      %v1091 = vld [vmem:[%s1070 + $0x78] sm:$0xff]
      %v1092 = vld [vmem:[%s1070 + $0x80] sm:$0xf]
      %vm1093 = vsmask.f32 5376
      %v1094 = vrot.slane %v243, 2
      %v1095 = vrot.slane %v245, 3
      %v1096 = vor.u32 %v1094, %v1095
      %v1097 = vrot.slane %v741, 2
      %v1098 = vrot.slane %v250, 3
      %v1099 = vor.u32 %v1097, %v1098
      %v1100 = vsel %vm1093, %v1096, %v1099
      %v1123 = vunpack.c.l.b16 %v1071
      %v1124 = vunpack.c.h.b16 %v1071
      %v1125 = vunpack.c.l.b16 %v1072
      %v1126 = vunpack.c.l.b16 %v1073
      %v1127 = vunpack.c.h.b16 %v1073
      %v1128 = vunpack.c.l.b16 %v1074
      %v1129 = vunpack.c.l.b16 %v1075
      %v1130 = vunpack.c.h.b16 %v1075
      %v1131 = vunpack.c.l.b16 %v1076
      %v1132 = vunpack.c.l.b16 %v1077
      %v1133 = vunpack.c.h.b16 %v1077
      %v1134 = vunpack.c.l.b16 %v1078
      %v1135 = vunpack.c.l.b16 %v1079
      %v1136 = vunpack.c.h.b16 %v1079
      %v1137 = vunpack.c.l.b16 %v1080
      %v1138 = vunpack.c.l.b16 %v1081
      %v1139 = vunpack.c.h.b16 %v1081
      %v1140 = vunpack.c.l.b16 %v1082
      %v1141 = vunpack.c.l.b16 %v1083
      %v1142 = vunpack.c.h.b16 %v1083
      %v1143 = vunpack.c.l.b16 %v1084
      %v1144 = vunpack.c.l.b16 %v1085
      %v1145 = vunpack.c.h.b16 %v1085
      %v1146 = vunpack.c.l.b16 %v1086
      %v1147 = vunpack.c.l.b16 %v1087
      %v1148 = vunpack.c.h.b16 %v1087
      %v1149 = vunpack.c.l.b16 %v1088
      %v1150 = vunpack.c.l.b16 %v1089
      %v1151 = vunpack.c.h.b16 %v1089
      %v1152 = vunpack.c.l.b16 %v1090
      %v1153 = vunpack.c.l.b16 %v1091
      %v1154 = vunpack.c.h.b16 %v1091
      %v1155 = vunpack.c.l.b16 %v1092
      %v1156 = vpack.c.b16 %v1126, %v1123
      %v1157 = vpack.c.b16 %v1127, %v1124
      %v1158 = vpack.c.b16 %v1128, %v1125
      %v1159 = vpack.c.b16 %v1132, %v1129
      %v1160 = vpack.c.b16 %v1133, %v1130
      %v1161 = vpack.c.b16 %v1134, %v1131
      %v1162 = vpack.c.b16 %v1138, %v1135
      %v1163 = vpack.c.b16 %v1139, %v1136
      %v1164 = vpack.c.b16 %v1140, %v1137
      %v1165 = vpack.c.b16 %v1144, %v1141
      %v1166 = vpack.c.b16 %v1145, %v1142
      %v1167 = vpack.c.b16 %v1146, %v1143
      %v1168 = vpack.c.b16 %v1150, %v1147
      %v1169 = vpack.c.b16 %v1151, %v1148
      %v1170 = vpack.c.b16 %v1152, %v1149
      %v1171 = vpack.c.b16 %v1153, %v1153
      %v1172 = vpack.c.b16 %v1154, %v1154
      %v1173 = vpack.c.b16 %v1155, %v1155
      %v1190 = vsel %vm342, %v1100, 0
      %v1193 = vsel %vm346, %v1171, 0
      %v1196 = vsel %vm346, %v1172, 0
      %v1199 = vsel %vm346, %v1173, 0
      %1201 = vmatpush.bf16.msra.mxu0 0
      %1202 = vmatpush.bf16.msra.mxu0 0
      %1203 = vmatpush.bf16.msra.mxu0 %v1193
      %1204 = vmatpush.bf16.msra.mxu0 %v1168
      %1205 = vmatpush.bf16.msra.mxu0 %v1165
      %1206 = vmatpush.bf16.msra.mxu0 %v1162
      %1207 = vmatpush.bf16.msra.mxu0 %v1159
      %1208 = vmatpush.bf16.msra.mxu0 %v1156
      %1209 = vmatmul.bf16.gmra.mxu0 %v1190
      %v1210 = vpop.f32.mrf.mxu0
      %v1211 = vadd.f32 0.0, %v1210
      %v1212 = vpop.f32.mrf.mxu0
      %v1213 = vadd.f32 0.0, %v1212
      %1214 = vdwg.mxu0
      %1215 = vmatpush.bf16.msra.mxu0 0
      %1216 = vmatpush.bf16.msra.mxu0 0
      %1217 = vmatpush.bf16.msra.mxu0 %v1196
      %1218 = vmatpush.bf16.msra.mxu0 %v1169
      %1219 = vmatpush.bf16.msra.mxu0 %v1166
      %1220 = vmatpush.bf16.msra.mxu0 %v1163
      %1221 = vmatpush.bf16.msra.mxu0 %v1160
      %1222 = vmatpush.bf16.msra.mxu0 %v1157
      %1223 = vmatmul.bf16.gmra.mxu0 %v1190
      %v1224 = vpop.f32.mrf.mxu0
      %v1225 = vadd.f32 0.0, %v1224
      %v1226 = vpop.f32.mrf.mxu0
      %v1227 = vadd.f32 0.0, %v1226
      %1228 = vdwg.mxu0
      %1229 = vmatpush.bf16.msra.mxu0 0
      %1230 = vmatpush.bf16.msra.mxu0 0
      %1231 = vmatpush.bf16.msra.mxu0 %v1199
      %1232 = vmatpush.bf16.msra.mxu0 %v1170
      %1233 = vmatpush.bf16.msra.mxu0 %v1167
      %1234 = vmatpush.bf16.msra.mxu0 %v1164
      %1235 = vmatpush.bf16.msra.mxu0 %v1161
      %1236 = vmatpush.bf16.msra.mxu0 %v1158
      %1237 = vmatmul.bf16.gmra.mxu0 %v1190
      %v1238 = vpop.f32.mrf.mxu0
      %v1239 = vadd.f32 0.0, %v1238
      %v1240 = vpop.f32.mrf.mxu0
      %v1241 = vadd.f32 0.0, %v1240
      %1242 = vdwg.mxu0
      %v1243 = vadd.f32 %v1064, %v1211
      %v1244 = vadd.f32 %v1065, %v1225
      %v1245 = vadd.f32 %v1066, %v1239
      %v1246 = vadd.f32 %v1067, %v1213
      %v1247 = vadd.f32 %v1068, %v1227
      %v1248 = vadd.f32 %v1069, %v1241
      %s1249 = scalar_lea.vmem %s1, 792
      %v1250 = vld [vmem:[%s1249] sm:$0xff]
      %v1251 = vld [vmem:[%s1249 + $0x8] sm:$0xf]
      %v1252 = vld [vmem:[%s1249 + $0xc] sm:$0xff]
      %v1253 = vld [vmem:[%s1249 + $0x14] sm:$0xf]
      %v1254 = vld [vmem:[%s1249 + $0x18] sm:$0xff]
      %v1255 = vld [vmem:[%s1249 + $0x20] sm:$0xf]
      %v1256 = vld [vmem:[%s1249 + $0x24] sm:$0xff]
      %v1257 = vld [vmem:[%s1249 + $0x2c] sm:$0xf]
      %v1258 = vld [vmem:[%s1249 + $0x30] sm:$0xff]
      %v1259 = vld [vmem:[%s1249 + $0x38] sm:$0xf]
      %v1260 = vld [vmem:[%s1249 + $0x3c] sm:$0xff]
      %v1261 = vld [vmem:[%s1249 + $0x44] sm:$0xf]
      %v1262 = vld [vmem:[%s1249 + $0x48] sm:$0xff]
      %v1263 = vld [vmem:[%s1249 + $0x50] sm:$0xf]
      %v1264 = vld [vmem:[%s1249 + $0x54] sm:$0xff]
      %v1265 = vld [vmem:[%s1249 + $0x5c] sm:$0xf]
      %v1266 = vld [vmem:[%s1249 + $0x60] sm:$0xff]
      %v1267 = vld [vmem:[%s1249 + $0x68] sm:$0xf]
      %v1268 = vld [vmem:[%s1249 + $0x6c] sm:$0xff]
      %v1269 = vld [vmem:[%s1249 + $0x74] sm:$0xf]
      %v1270 = vld [vmem:[%s1249 + $0x78] sm:$0xff]
      %v1271 = vld [vmem:[%s1249 + $0x80] sm:$0xf]
      %vm1272 = vcmask 1044480
      %v1273 = vrot.slane %v239, 3
      %v1274 = vrot.slane %v240, 3
      %v1275 = vsel %vm1272, %v1273, %v1274
      %v1298 = vunpack.c.l.b16 %v1250
      %v1299 = vunpack.c.h.b16 %v1250
      %v1300 = vunpack.c.l.b16 %v1251
      %v1301 = vunpack.c.l.b16 %v1252
      %v1302 = vunpack.c.h.b16 %v1252
      %v1303 = vunpack.c.l.b16 %v1253
      %v1304 = vunpack.c.l.b16 %v1254
      %v1305 = vunpack.c.h.b16 %v1254
      %v1306 = vunpack.c.l.b16 %v1255
      %v1307 = vunpack.c.l.b16 %v1256
      %v1308 = vunpack.c.h.b16 %v1256
      %v1309 = vunpack.c.l.b16 %v1257
      %v1310 = vunpack.c.l.b16 %v1258
      %v1311 = vunpack.c.h.b16 %v1258
      %v1312 = vunpack.c.l.b16 %v1259
      %v1313 = vunpack.c.l.b16 %v1260
      %v1314 = vunpack.c.h.b16 %v1260
      %v1315 = vunpack.c.l.b16 %v1261
      %v1316 = vunpack.c.l.b16 %v1262
      %v1317 = vunpack.c.h.b16 %v1262
      %v1318 = vunpack.c.l.b16 %v1263
      %v1319 = vunpack.c.l.b16 %v1264
      %v1320 = vunpack.c.h.b16 %v1264
      %v1321 = vunpack.c.l.b16 %v1265
      %v1322 = vunpack.c.l.b16 %v1266
      %v1323 = vunpack.c.h.b16 %v1266
      %v1324 = vunpack.c.l.b16 %v1267
      %v1325 = vunpack.c.l.b16 %v1268
      %v1326 = vunpack.c.h.b16 %v1268
      %v1327 = vunpack.c.l.b16 %v1269
      %v1328 = vunpack.c.l.b16 %v1270
      %v1329 = vunpack.c.h.b16 %v1270
      %v1330 = vunpack.c.l.b16 %v1271
      %v1331 = vpack.c.b16 %v1301, %v1298
      %v1332 = vpack.c.b16 %v1302, %v1299
      %v1333 = vpack.c.b16 %v1303, %v1300
      %v1334 = vpack.c.b16 %v1307, %v1304
      %v1335 = vpack.c.b16 %v1308, %v1305
      %v1336 = vpack.c.b16 %v1309, %v1306
      %v1337 = vpack.c.b16 %v1313, %v1310
      %v1338 = vpack.c.b16 %v1314, %v1311
      %v1339 = vpack.c.b16 %v1315, %v1312
      %v1340 = vpack.c.b16 %v1319, %v1316
      %v1341 = vpack.c.b16 %v1320, %v1317
      %v1342 = vpack.c.b16 %v1321, %v1318
      %v1343 = vpack.c.b16 %v1325, %v1322
      %v1344 = vpack.c.b16 %v1326, %v1323
      %v1345 = vpack.c.b16 %v1327, %v1324
      %v1346 = vpack.c.b16 %v1328, %v1328
      %v1347 = vpack.c.b16 %v1329, %v1329
      %v1348 = vpack.c.b16 %v1330, %v1330
      %v1365 = vsel %vm342, %v1275, 0
      %v1368 = vsel %vm346, %v1346, 0
      %v1371 = vsel %vm346, %v1347, 0
      %v1374 = vsel %vm346, %v1348, 0
      %1376 = vmatpush.bf16.msra.mxu0 0
      %1377 = vmatpush.bf16.msra.mxu0 0
      %1378 = vmatpush.bf16.msra.mxu0 %v1368
      %1379 = vmatpush.bf16.msra.mxu0 %v1343
      %1380 = vmatpush.bf16.msra.mxu0 %v1340
      %1381 = vmatpush.bf16.msra.mxu0 %v1337
      %1382 = vmatpush.bf16.msra.mxu0 %v1334
      %1383 = vmatpush.bf16.msra.mxu0 %v1331
      %1384 = vmatmul.bf16.gmra.mxu0 %v1365
      %v1385 = vpop.f32.mrf.mxu0
      %v1386 = vadd.f32 0.0, %v1385
      %v1387 = vpop.f32.mrf.mxu0
      %v1388 = vadd.f32 0.0, %v1387
      %1389 = vdwg.mxu0
      %1390 = vmatpush.bf16.msra.mxu0 0
      %1391 = vmatpush.bf16.msra.mxu0 0
      %1392 = vmatpush.bf16.msra.mxu0 %v1371
      %1393 = vmatpush.bf16.msra.mxu0 %v1344
      %1394 = vmatpush.bf16.msra.mxu0 %v1341
      %1395 = vmatpush.bf16.msra.mxu0 %v1338
      %1396 = vmatpush.bf16.msra.mxu0 %v1335
      %1397 = vmatpush.bf16.msra.mxu0 %v1332
      %1398 = vmatmul.bf16.gmra.mxu0 %v1365
      %v1399 = vpop.f32.mrf.mxu0
      %v1400 = vadd.f32 0.0, %v1399
      %v1401 = vpop.f32.mrf.mxu0
      %v1402 = vadd.f32 0.0, %v1401
      %1403 = vdwg.mxu0
      %1404 = vmatpush.bf16.msra.mxu0 0
      %1405 = vmatpush.bf16.msra.mxu0 0
      %1406 = vmatpush.bf16.msra.mxu0 %v1374
      %1407 = vmatpush.bf16.msra.mxu0 %v1345
      %1408 = vmatpush.bf16.msra.mxu0 %v1342
      %1409 = vmatpush.bf16.msra.mxu0 %v1339
      %1410 = vmatpush.bf16.msra.mxu0 %v1336
      %1411 = vmatpush.bf16.msra.mxu0 %v1333
      %1412 = vmatmul.bf16.gmra.mxu0 %v1365
      %v1413 = vpop.f32.mrf.mxu0
      %v1414 = vadd.f32 0.0, %v1413
      %v1415 = vpop.f32.mrf.mxu0
      %v1416 = vadd.f32 0.0, %v1415
      %1417 = vdwg.mxu0
      %v1418 = vadd.f32 %v1243, %v1386
      %v1419 = vadd.f32 %v1244, %v1400
      %v1420 = vadd.f32 %v1245, %v1414
      %v1421 = vadd.f32 %v1246, %v1388
      %v1422 = vadd.f32 %v1247, %v1402
      %v1423 = vadd.f32 %v1248, %v1416
      %v1424 = vadd.f32 %v1418, %v1421
      %v1425 = vadd.f32 %v1419, %v1422
      %v1426 = vadd.f32 %v1420, %v1423
      %1427 = vst [vmem:[%s178] sm:$0xff] %v1424
      %1428 = vst [vmem:[%s178 + $0x8] sm:$0xff] %v1425
      %1429 = vst [vmem:[%s178 + $0x10] sm:$0xff] %v1426
      %v1430 = vmul.f32 %v1418, %v1418
      %v1431 = vmul.f32 %v1419, %v1419
      %v1432 = vmul.f32 %v1420, %v1420
      %v1433 = vmul.f32 %v1421, %v1421
      %v1434 = vmul.f32 %v1422, %v1422
      %v1435 = vmul.f32 %v1423, %v1423
      %v1436 = vadd.f32 %v1430, %v1433
      %v1437 = vadd.f32 %v1431, %v1434
      %v1438 = vadd.f32 %v1432, %v1435
      %1439 = vst [vmem:[%s183] sm:$0xff] %v1436
      %1440 = vst [vmem:[%s183 + $0x8] sm:$0xff] %v1437
      %1441 = vst [vmem:[%s183 + $0x10] sm:$0xff] %v1438
      %p1442 = scmp.lt.s32.totalorder %s15, 1
      %s1443 = scalar_select %p1442, %s15, 1
      %s1444 = smul.addr %s1443, 3
      %s1445 = smul.addr %s1444, 8
      %s1446 = scalar_lea.vmem %s2, %s1445
      %p1447 = scmp.lt.s32.totalorder %s15, 1
      %s1448 = scalar_select %p1447, %s15, 1
      %s1449 = smul.addr %s1448, 3
      %s1450 = smul.addr %s1449, 8
      %s1451 = scalar_lea.vmem %s3, %s1450
      // Predicated region
      $region29: #{multi_res_mlp.2} parent=27 // pred_check
        %p1452 = pneg %p80
      $region30: #{multi_res_mlp.2} parent=27 // pred_check_branch
        %1454 = sbr.rel (%p1452) target = $region32
      $region31: #{multi_res_mlp.2} parent=27 // pred_region
        _
      $region32: #{multi_res_mlp.2} parent=27 // pred_fallthru
        _
      // Predicated region
      $region33: #{multi_res_mlp.2} parent=27 // pred_check
        %p1455 = pneg %p106
      $region34: #{multi_res_mlp.2} parent=27 // pred_check_branch
        %1457 = sbr.rel (%p1455) target = $region36
      $region35: #{multi_res_mlp.2} parent=27 // pred_region
        _
      $region36: #{multi_res_mlp.2} parent=27 // pred_fallthru
        _
    $region28: #{multi_res_mlp.2} parent=5 // pred_fallthru
      _
    %p1458 = scmp.le.s32.totalorder 2, %s10
    // Predicated region
    $region37: #{multi_res_mlp.2} parent=5 // pred_check
      %p1459 = pneg %p1458
    $region38: #{multi_res_mlp.2} parent=5 // pred_check_branch
      %1461 = sbr.rel (%p1459) target = $region40
    $region39: #{multi_res_mlp.2} parent=5 // pred_region
      %s1462 = ssub.s32 %s10, 2
      // Predicated region
      $region41: #{multi_res_mlp.2} parent=39 // pred_check
        %p1463 = pneg %p86
      $region42: #{multi_res_mlp.2} parent=39 // pred_check_branch
        %1465 = sbr.rel (%p1463) target = $region44
      $region43: #{multi_res_mlp.2} parent=39 // pred_region
        %p1466 = scmp.lt.s32.totalorder %s16, 1
        %s1467 = scalar_select %p1466, %s16, 1
        %s1468 = smul.addr %s1467, 3
        %s1469 = smul.addr %s1468, 8
        %s1470 = scalar_lea.vmem %s2, %s1469
      $region44: #{multi_res_mlp.2} parent=39 // pred_fallthru
        _
      // Predicated region
      $region45: #{multi_res_mlp.2} parent=39 // pred_check
        %p1471 = pneg %p112
      $region46: #{multi_res_mlp.2} parent=39 // pred_check_branch
        %1473 = sbr.rel (%p1471) target = $region48
      $region47: #{multi_res_mlp.2} parent=39 // pred_region
        %p1474 = scmp.lt.s32.totalorder %s16, 1
        %s1475 = scalar_select %p1474, %s16, 1
        %s1476 = smul.addr %s1475, 3
        %s1477 = smul.addr %s1476, 8
        %s1478 = scalar_lea.vmem %s3, %s1477
      $region48: #{multi_res_mlp.2} parent=39 // pred_fallthru
        _
    $region40: #{multi_res_mlp.2} parent=5 // pred_fallthru
      _
  $region6: #{multi_res_mlp.2} parent=0 // loop_footer
    %s14 = sadd.s32 1, %s10
  $region7: #{multi_res_mlp.2} parent=0 // loop_footer_branch
    %9 = sbr.rel target = $region3
  $region8: #{multi_res_mlp.2} parent=0 // loop_exit
    _

// kernel: tile.13
$region0: #{tile.13}
  #allocation0 [shape = 's32[1]{0}', space=sflag, size = 0x4, scoped, tag = 'scoped memory for tile.13']
  %s0 = inlined_call_operand.vmem [shape: f32[24], index: 0, kind: input, shape index: {}]
  %s1 = inlined_call_operand.vmem [shape: f32[16,24], index: 1, kind: output, shape index: {}]
  // Predicated region
  $region2: #{tile.13} parent=0 // pred_check
    _
  $region3: #{tile.13} parent=0 // pred_check_branch
    %3 = sbr.rel (0) target = $region5
  $region4: #{tile.13} parent=0 // pred_region
    _
  $region5: #{tile.13} parent=0 // pred_fallthru
    _
  %v4 = vld [vmem:[%s0] ss:$0 sm:$0xff]
  %5 = vst [vmem:[%s1] sm:$0xff] %v4
  %s6 = scalar_lea.vmem %s1, 8
  %7 = vst [vmem:[%s6] sm:$0xff] %v4

// kernel: tile.14
$region0: #{tile.14}
  %s0 = inlined_call_operand.vmem [shape: f32[16,24], index: 0, kind: input, shape index: {}]
  %s1 = inlined_call_operand.vmem [shape: f32[1,384], index: 1, kind: output, shape index: {}]
  $region1: #{tile.14} parent=0
    #allocation0 [shape = 'u8[12288]{0}', space=vmem, size = 0x3000, scoped, tag = 'scoped mem for output reshape']
    %v2 = vld [vmem:[%s0] sm:$0x1]
    %vm3 = vcmask 195584
    %4 = vst.msk [vmem:[#allocation0] sm:$0x1] %vm3, %v2
    %s5 = scalar_lea.vmem %s0, 5
    %v6 = vld [vmem:[%s5] sm:$0x1]
    %s7 = scalar_lea.vmem %s0, 5
    %v8 = vld [vmem:[%s7] sm:$0x1]
    %vm9 = vcmask 64512
    %v10 = vsel %vm9, %v8, %v6
    %11 = vrot.lane.b32.xlu0 %v10, 120
    %v12 = vpop.permute.xlu0 %11
    %vm13 = vcmask 130048
    %s14 = scalar_lea.vmem [#allocation0], 8
    %15 = vst.msk [vmem:[%s14] sm:$0x1] %vm13, %v12
    %vm16 = vcmask 1048512
    %17 = vst.msk [vmem:[#allocation0] sm:$0x1] %vm16, %v12
    %s18 = scalar_lea.vmem %s0, 10
    %v19 = vld [vmem:[%s18] sm:$0x1]
    %s20 = scalar_lea.vmem %s0, 10
    %v21 = vld [vmem:[%s20] sm:$0x1]
    %vm22 = vcmask 130048
    %v23 = vsel %vm22, %v21, %v19
    %24 = vrot.lane.b32.xlu0 %v23, 112
    %v25 = vpop.permute.xlu0 %24
    %vm26 = vcmask 64512
    %s27 = scalar_lea.vmem [#allocation0], 16
    %28 = vst.msk [vmem:[%s27] sm:$0x1] %vm26, %v25
    %vm29 = vcmask 1048448
    %s30 = scalar_lea.vmem [#allocation0], 8
    %31 = vst.msk [vmem:[%s30] sm:$0x1] %vm29, %v25
    %s32 = scalar_lea.vmem %s0, 15
    %v33 = vld [vmem:[%s32] sm:$0x1]
    %34 = vrot.lane.b32.xlu0 %v33, 104
    %v35 = vpop.permute.xlu0 %34
    %vm36 = vcmask 1048384
    %s37 = scalar_lea.vmem [#allocation0], 16
    %38 = vst.msk [vmem:[%s37] sm:$0x1] %vm36, %v35
    %s39 = scalar_lea.vmem %s0, 4
    %v40 = vld [vmem:[%s39] sm:$0x1]
    %41 = vrot.lane.b32.xlu0 %v40, 96
    %v42 = vpop.permute.xlu0 %41
    %vm43 = vcmask 982784
    %44 = vst.msk [vmem:[#allocation0] sm:$0x1] %vm43, %v42
    %s45 = scalar_lea.vmem %s0, 9
    %v46 = vld [vmem:[%s45] sm:$0x1]
    %47 = vrot.lane.b32.xlu0 %v46, 88
    %v48 = vpop.permute.xlu0 %47
    %vm49 = vcmask 917184
    %s50 = scalar_lea.vmem [#allocation0], 8
    %51 = vst.msk [vmem:[%s50] sm:$0x1] %vm49, %v48
    %s52 = scalar_lea.vmem %s0, 14
    %v53 = vld [vmem:[%s52] sm:$0x1]
    %54 = vrot.lane.b32.xlu0 %v53, 80
    %v55 = vpop.permute.xlu0 %54
    %vm56 = vcmask 851584
    %s57 = scalar_lea.vmem [#allocation0], 16
    %58 = vst.msk [vmem:[%s57] sm:$0x1] %vm56, %v55
    %s59 = scalar_lea.vmem %s0, 3
    %v60 = vld [vmem:[%s59] sm:$0x1]
    %61 = vrot.lane.b32.xlu0 %v60, 72
    %v62 = vpop.permute.xlu0 %61
    %vm63 = vcmask 785984
    %64 = vst.msk [vmem:[#allocation0] sm:$0x1] %vm63, %v62
    %s65 = scalar_lea.vmem %s0, 8
    %v66 = vld [vmem:[%s65] sm:$0x1]
    %67 = vrot.lane.b32.xlu0 %v66, 64
    %v68 = vpop.permute.xlu0 %67
    %vm69 = vcmask 720384
    %s70 = scalar_lea.vmem [#allocation0], 8
    %71 = vst.msk [vmem:[%s70] sm:$0x1] %vm69, %v68
    %s72 = scalar_lea.vmem %s0, 13
    %v73 = vld [vmem:[%s72] sm:$0x1]
    %74 = vrot.lane.b32.xlu0 %v73, 56
    %v75 = vpop.permute.xlu0 %74
    %vm76 = vcmask 654784
    %s77 = scalar_lea.vmem [#allocation0], 16
    %78 = vst.msk [vmem:[%s77] sm:$0x1] %vm76, %v75
    %s79 = scalar_lea.vmem %s0, 2
    %v80 = vld [vmem:[%s79] sm:$0x1]
    %81 = vrot.lane.b32.xlu0 %v80, 48
    %v82 = vpop.permute.xlu0 %81
    %vm83 = vcmask 589184
    %84 = vst.msk [vmem:[#allocation0] sm:$0x1] %vm83, %v82
    %s85 = scalar_lea.vmem %s0, 7
    %v86 = vld [vmem:[%s85] sm:$0x1]
    %87 = vrot.lane.b32.xlu0 %v86, 40
    %v88 = vpop.permute.xlu0 %87
    %vm89 = vcmask 523584
    %s90 = scalar_lea.vmem [#allocation0], 8
    %91 = vst.msk [vmem:[%s90] sm:$0x1] %vm89, %v88
    %s92 = scalar_lea.vmem %s0, 12
    %v93 = vld [vmem:[%s92] sm:$0x1]
    %94 = vrot.lane.b32.xlu0 %v93, 32
    %v95 = vpop.permute.xlu0 %94
    %vm96 = vcmask 457984
    %s97 = scalar_lea.vmem [#allocation0], 16
    %98 = vst.msk [vmem:[%s97] sm:$0x1] %vm96, %v95
    %s99 = scalar_lea.vmem %s0, 1
    %v100 = vld [vmem:[%s99] sm:$0x1]
    %101 = vrot.lane.b32.xlu0 %v100, 24
    %v102 = vpop.permute.xlu0 %101
    %vm103 = vcmask 392384
    %104 = vst.msk [vmem:[#allocation0] sm:$0x1] %vm103, %v102
    %s105 = scalar_lea.vmem %s0, 6
    %v106 = vld [vmem:[%s105] sm:$0x1]
    %107 = vrot.lane.b32.xlu0 %v106, 16
    %v108 = vpop.permute.xlu0 %107
    %vm109 = vcmask 326784
    %s110 = scalar_lea.vmem [#allocation0], 8
    %111 = vst.msk [vmem:[%s110] sm:$0x1] %vm109, %v108
    %s112 = scalar_lea.vmem %s0, 11
    %v113 = vld [vmem:[%s112] sm:$0x1]
    %114 = vrot.lane.b32.xlu0 %v113, 8
    %v115 = vpop.permute.xlu0 %114
    %vm116 = vcmask 261184
    %s117 = scalar_lea.vmem [#allocation0], 16
    %118 = vst.msk [vmem:[%s117] sm:$0x1] %vm116, %v115
    %s120 = ssub.s32 2, 1
    %v121 = vld [vmem:[#allocation0] sm:%s120]
    %s123 = ssub.s32 2, 1
    %124 = vst [vmem:[%s1] sm:%s123] %v121
    %s125 = scalar_lea.vmem [#allocation0], 8
    %v126 = vld [vmem:[%s125] sm:%s120]
    %s128 = ssub.s32 2, 1
    %s129 = scalar_lea.vmem %s1, 1
    %130 = vst [vmem:[%s129] sm:%s128] %v126
    %s131 = scalar_lea.vmem [#allocation0], 16
    %v132 = vld [vmem:[%s131] sm:%s120]
    %s134 = ssub.s32 2, 1
    %s135 = scalar_lea.vmem %s1, 2
    %136 = vst [vmem:[%s135] sm:%s134] %v132

// kernel: multi_res_mlp.3
$region0: #{multi_res_mlp.3}
  #allocation0 [shape = 'u32[]', space=smem, size = 0x4, offset = 0x4, fixed_abs, tag = 'smem constant byte address 0x4 - core index']
  #allocation1 [shape = 'u32[72,128]{1,0:T(1,128)}', space=vmem, size = 0x9000, scoped, tag = 'internal scratch']
  %s0 = inlined_call_operand.vmem [shape: bf16[2,22,88], index: 0, kind: input, shape index: {}]
  %s1 = inlined_call_operand.vmem [shape: bf16[7,88,384], index: 1, kind: input, shape index: {}]
  %s2 = inlined_call_operand.vmem [shape: f32[1,384], index: 2, kind: input, shape index: {}]
  %s3 = inlined_call_operand.vmem [shape: f32[1,384], index: 3, kind: input, shape index: {}]
  %s4 = inlined_call_operand.vmem [shape: bf16[32,384], index: 4, kind: output, shape index: {}]
  %s5 = sld [smem:[#allocation0]]
  $region49: #{multi_res_mlp.3} parent=0
    _
  %s7 = ssub.s32 1, %s5
  %s8 = scalar_select 0, %s7, %s5
  loop: start=0, step=1, limit=4
  $region2: #{multi_res_mlp.3} parent=0 // loop_pre_header
    _
  $region3: #{multi_res_mlp.3} parent=0 // loop_header
    %s10 = sphi 0, %s14
    %p11 = scmp.ge.s32.totalorder %s10, 4
    %s20 = sphi 0, %s22
    %s23 = sphi 0, %s20
    %s24 = sphi 0, %s23
    %s40 = sphi 0, %s24
    %s44 = sphi 0, %s44
    %s46 = sphi 0, %s44
    %s47 = sphi 0, %s46
    %s61 = sphi 0, %s47
    %s65 = sphi 0, %s65
    %s67 = sphi 0, %s65
    %s68 = sphi 0, %s67
    %s82 = sphi 0, %s68
    %s86 = sphi 0, %s86
    %s88 = sphi 0, %s86
    %s89 = sphi 0, %s88
    %s103 = sphi 0, %s89
    %s109 = sphi 0, %s111
    %s112 = sphi 0, %s109
    %s113 = sphi 0, %s112
    %s129 = sphi 0, %s113
  $region4: #{multi_res_mlp.3} parent=0 // loop_header_branch
    %13 = sbr.rel (%p11) target = $region8
  $region5: #{multi_res_mlp.3} parent=0 // loop_body
    %s15 = ssub.s32 %s10, 1
    %s16 = ssub.s32 %s10, 2
    %s17 = sadd.s32 %s10, 1
    %s18 = ssub.s32 %s10, %s17
    %p19 = scmp.eq.s32.totalorder %s18, 0
    %s21 = sadd.s32 %s20, 1
    %s22 = scalar_select %p19, %s20, %s21
    %p25 = pneg %p19
    %p26 = scmp.eq.s32.totalorder %s10, 1
    %p27 = por %p25, %p26
    %p28 = scmp.ne.s32.totalorder %s20, %s23
    %p29 = scmp.eq.s32.totalorder %s10, 0
    %p30 = por %p28, %p29
    %p31 = scmp.ne.s32.totalorder %s20, %s23
    %p32 = scmp.eq.s32.totalorder %s15, 1
    %p33 = por %p31, %p32
    %p34 = scmp.ne.s32.totalorder %s23, %s24
    %p35 = scmp.eq.s32.totalorder %s15, 0
    %p36 = por %p34, %p35
    %p37 = scmp.ne.s32.totalorder %s23, %s24
    %p38 = scmp.eq.s32.totalorder %s16, 1
    %p39 = por %p37, %p38
    %p41 = scmp.ne.s32.totalorder %s24, %s40
    %p42 = scmp.eq.s32.totalorder %s16, 0
    %p43 = por %p41, %p42
    %s45 = sadd.s32 %s44, 1
    %p48 = scmp.eq.s32.totalorder %s10, 1
    %p49 = scmp.ne.s32.totalorder %s44, %s46
    %p50 = scmp.eq.s32.totalorder %s10, 0
    %p51 = por %p49, %p50
    %p52 = scmp.ne.s32.totalorder %s44, %s46
    %p53 = scmp.eq.s32.totalorder %s15, 1
    %p54 = por %p52, %p53
    %p55 = scmp.ne.s32.totalorder %s46, %s47
    %p56 = scmp.eq.s32.totalorder %s15, 0
    %p57 = por %p55, %p56
    %p58 = scmp.ne.s32.totalorder %s46, %s47
    %p59 = scmp.eq.s32.totalorder %s16, 1
    %p60 = por %p58, %p59
    %p62 = scmp.ne.s32.totalorder %s47, %s61
    %p63 = scmp.eq.s32.totalorder %s16, 0
    %p64 = por %p62, %p63
    %s66 = sadd.s32 %s65, 1
    %p69 = scmp.eq.s32.totalorder %s10, 1
    %p70 = scmp.ne.s32.totalorder %s65, %s67
    %p71 = scmp.eq.s32.totalorder %s10, 0
    %p72 = por %p70, %p71
    %p73 = scmp.ne.s32.totalorder %s65, %s67
    %p74 = scmp.eq.s32.totalorder %s15, 1
    %p75 = por %p73, %p74
    %p76 = scmp.ne.s32.totalorder %s67, %s68
    %p77 = scmp.eq.s32.totalorder %s15, 0
    %p78 = por %p76, %p77
    %p79 = scmp.ne.s32.totalorder %s67, %s68
    %p80 = scmp.eq.s32.totalorder %s16, 1
    %p81 = por %p79, %p80
    %p83 = scmp.ne.s32.totalorder %s68, %s82
    %p84 = scmp.eq.s32.totalorder %s16, 0
    %p85 = por %p83, %p84
    %s87 = sadd.s32 %s86, 1
    %p90 = scmp.eq.s32.totalorder %s10, 1
    %p91 = scmp.ne.s32.totalorder %s86, %s88
    %p92 = scmp.eq.s32.totalorder %s10, 0
    %p93 = por %p91, %p92
    %p94 = scmp.ne.s32.totalorder %s86, %s88
    %p95 = scmp.eq.s32.totalorder %s15, 1
    %p96 = por %p94, %p95
    %p97 = scmp.ne.s32.totalorder %s88, %s89
    %p98 = scmp.eq.s32.totalorder %s15, 0
    %p99 = por %p97, %p98
    %p100 = scmp.ne.s32.totalorder %s88, %s89
    %p101 = scmp.eq.s32.totalorder %s16, 1
    %p102 = por %p100, %p101
    %p104 = scmp.ne.s32.totalorder %s89, %s103
    %p105 = scmp.eq.s32.totalorder %s16, 0
    %p106 = por %p104, %p105
    %s107 = ssub.s32 %s10, %s17
    %p108 = scmp.eq.s32.totalorder %s107, 0
    %s110 = sadd.s32 %s109, 1
    %s111 = scalar_select %p108, %s109, %s110
    %p114 = pneg %p108
    %p115 = scmp.eq.s32.totalorder %s10, 1
    %p116 = por %p114, %p115
    %p117 = scmp.ne.s32.totalorder %s109, %s112
    %p118 = scmp.eq.s32.totalorder %s10, 0
    %p119 = por %p117, %p118
    %p120 = scmp.ne.s32.totalorder %s109, %s112
    %p121 = scmp.eq.s32.totalorder %s15, 1
    %p122 = por %p120, %p121
    %p123 = scmp.ne.s32.totalorder %s112, %s113
    %p124 = scmp.eq.s32.totalorder %s15, 0
    %p125 = por %p123, %p124
    %p126 = scmp.ne.s32.totalorder %s112, %s113
    %p127 = scmp.eq.s32.totalorder %s16, 1
    %p128 = por %p126, %p127
    %p130 = scmp.ne.s32.totalorder %s113, %s129
    %p131 = scmp.eq.s32.totalorder %s16, 0
    %p132 = por %p130, %p131
    %p133 = scmp.le.s32.totalorder 1, %s10
    %p134 = scmp.lt.s32.totalorder %s10, 3
    %p135 = pnand %p133, %p134
    %p136 = pneg %p135
    // Predicated region
    $region9: #{multi_res_mlp.3} parent=5 // pred_check
      _
    $region10: #{multi_res_mlp.3} parent=5 // pred_check_branch
      %138 = sbr.rel (%p135) target = $region12
    $region11: #{multi_res_mlp.3} parent=5 // pred_region
      %s139 = ssub.s32 %s10, 1
      // Predicated region
      $region13: #{multi_res_mlp.3} parent=11 // pred_check
        %p140 = pneg %p57
      $region14: #{multi_res_mlp.3} parent=11 // pred_check_branch
        %142 = sbr.rel (%p140) target = $region16
      $region15: #{multi_res_mlp.3} parent=11 // pred_region
        _
      $region16: #{multi_res_mlp.3} parent=11 // pred_fallthru
        _
      // Predicated region
      $region17: #{multi_res_mlp.3} parent=11 // pred_check
        %p143 = pneg %p78
      $region18: #{multi_res_mlp.3} parent=11 // pred_check_branch
        %145 = sbr.rel (%p143) target = $region20
      $region19: #{multi_res_mlp.3} parent=11 // pred_region
        _
      $region20: #{multi_res_mlp.3} parent=11 // pred_fallthru
        _
      // Predicated region
      $region21: #{multi_res_mlp.3} parent=11 // pred_check
        %p146 = pneg %p99
      $region22: #{multi_res_mlp.3} parent=11 // pred_check_branch
        %148 = sbr.rel (%p146) target = $region24
      $region23: #{multi_res_mlp.3} parent=11 // pred_region
        _
      $region24: #{multi_res_mlp.3} parent=11 // pred_fallthru
        _
    $region12: #{multi_res_mlp.3} parent=5 // pred_fallthru
      _
    %p149 = scmp.lt.s32.totalorder %s10, 2
    // Predicated region
    $region25: #{multi_res_mlp.3} parent=5 // pred_check
      %p150 = pneg %p149
    $region26: #{multi_res_mlp.3} parent=5 // pred_check_branch
      %152 = sbr.rel (%p150) target = $region28
    $region27: #{multi_res_mlp.3} parent=5 // pred_region
      // Predicated region
      $region29: #{multi_res_mlp.3} parent=27 // pred_check
        %p153 = pneg %p30
      $region30: #{multi_res_mlp.3} parent=27 // pred_check_branch
        %155 = sbr.rel (%p153) target = $region32
      $region31: #{multi_res_mlp.3} parent=27 // pred_region
        %p156 = scmp.lt.s32.totalorder %s10, 1
        %s157 = scalar_select %p156, %s10, 1
        %s158 = smul.addr %s157, 3
        %s159 = smul.addr %s158, 4
        %s160 = scalar_lea.vmem %s0, %s159
      $region32: #{multi_res_mlp.3} parent=27 // pred_fallthru
        _
    $region28: #{multi_res_mlp.3} parent=5 // pred_fallthru
      _
    %p161 = scmp.le.s32.totalorder 1, %s10
    %p162 = scmp.lt.s32.totalorder %s10, 3
    %p163 = pnand %p161, %p162
    %p164 = pneg %p163
    // Predicated region
    $region33: #{multi_res_mlp.3} parent=5 // pred_check
      _
    $region34: #{multi_res_mlp.3} parent=5 // pred_check_branch
      %166 = sbr.rel (%p163) target = $region36
    $region35: #{multi_res_mlp.3} parent=5 // pred_region
      %s167 = ssub.s32 %s10, 1
      %p168 = scmp.lt.s32.totalorder %s15, 1
      %s169 = scalar_select %p168, %s15, 1
      %s170 = smul.addr %s169, 3
      %s171 = smul.addr %s170, 4
      %s172 = scalar_lea.vmem %s0, %s171
      %p173 = pneg %p36
      %p174 = pneg %p33
      %p175 = pneg %p57
      %p176 = pneg %p54
      %p177 = pneg %p78
      %p178 = pneg %p75
      %p179 = pneg %p99
      %p180 = pneg %p96
      %p181 = pneg %p125
      %p182 = pneg %p122
      %s183 = smul.u32 2, %s15
      %p184 = scmp.lt.s32.totalorder %s183, 3
      %s185 = scalar_select %p184, %s183, 3
      %s186 = smul.addr %s185, 3
      %s187 = smul.addr %s186, 4
      %s188 = scalar_lea.vmem %s4, %s187
      %p189 = scmp.lt.s32.totalorder %s15, 1
      %s190 = scalar_select %p189, %s15, 1
      %s191 = smul.addr %s190, 3
      %s192 = smul.addr %s191, 4
      %s193 = scalar_lea.vmem %s0, %s192
      %s194 = smul.u32 2, %s15
      %p195 = scmp.lt.s32.totalorder %s194, 3
      %s196 = scalar_select %p195, %s194, 3
      %s197 = smul.addr %s196, 3
      %s198 = smul.addr %s197, 4
      %s199 = scalar_lea.vmem %s4, %s198
      %s200 = smul.u32 2, %s15
      %v202 = vld [vmem:[%s193] sm:$0xf]
      %v203 = vld [vmem:[%s193 + $0x4] sm:$0xf]
      %v204 = vld [vmem:[%s193 + $0x8] sm:$0x7]
      %v205 = vld [vmem:[%s1] sm:$0xff]
      %v206 = vld [vmem:[%s1 + $0x8] sm:$0xf]
      %v207 = vld [vmem:[%s1 + $0xc] sm:$0xff]
      %v208 = vld [vmem:[%s1 + $0x14] sm:$0xf]
      %v209 = vld [vmem:[%s1 + $0x18] sm:$0xff]
      %v210 = vld [vmem:[%s1 + $0x20] sm:$0xf]
      %v211 = vld [vmem:[%s1 + $0x24] sm:$0xff]
      %v212 = vld [vmem:[%s1 + $0x2c] sm:$0xf]
      %v213 = vld [vmem:[%s1 + $0x30] sm:$0xff]
      %v214 = vld [vmem:[%s1 + $0x38] sm:$0xf]
      %v215 = vld [vmem:[%s1 + $0x3c] sm:$0xff]
      %v216 = vld [vmem:[%s1 + $0x44] sm:$0xf]
      %v217 = vld [vmem:[%s1 + $0x48] sm:$0xff]
      %v218 = vld [vmem:[%s1 + $0x50] sm:$0xf]
      %v219 = vld [vmem:[%s1 + $0x54] sm:$0xff]
      %v220 = vld [vmem:[%s1 + $0x5c] sm:$0xf]
      %v221 = vld [vmem:[%s1 + $0x60] sm:$0xff]
      %v222 = vld [vmem:[%s1 + $0x68] sm:$0xf]
      %v223 = vld [vmem:[%s1 + $0x6c] sm:$0xff]
      %v224 = vld [vmem:[%s1 + $0x74] sm:$0xf]
      %v225 = vld [vmem:[%s1 + $0x78] sm:$0xff]
      %v226 = vld [vmem:[%s1 + $0x80] sm:$0xf]
      %s227 = scalar_lea.vmem %s1, 132
      %v228 = vld [vmem:[%s227] sm:$0xff]
      %v229 = vld [vmem:[%s227 + $0x8] sm:$0xf]
      %v230 = vld [vmem:[%s227 + $0xc] sm:$0xff]
      %v231 = vld [vmem:[%s227 + $0x14] sm:$0xf]
      %v232 = vld [vmem:[%s227 + $0x18] sm:$0xff]
      %v233 = vld [vmem:[%s227 + $0x20] sm:$0xf]
      %v234 = vld [vmem:[%s227 + $0x24] sm:$0xff]
      %v235 = vld [vmem:[%s227 + $0x2c] sm:$0xf]
      %v236 = vld [vmem:[%s227 + $0x30] sm:$0xff]
      %v237 = vld [vmem:[%s227 + $0x38] sm:$0xf]
      %v238 = vld [vmem:[%s227 + $0x3c] sm:$0xff]
      %v239 = vld [vmem:[%s227 + $0x44] sm:$0xf]
      %v240 = vld [vmem:[%s227 + $0x48] sm:$0xff]
      %v241 = vld [vmem:[%s227 + $0x50] sm:$0xf]
      %v242 = vld [vmem:[%s227 + $0x54] sm:$0xff]
      %v243 = vld [vmem:[%s227 + $0x5c] sm:$0xf]
      %v244 = vld [vmem:[%s227 + $0x60] sm:$0xff]
      %v245 = vld [vmem:[%s227 + $0x68] sm:$0xf]
      %v246 = vld [vmem:[%s227 + $0x6c] sm:$0xff]
      %v247 = vld [vmem:[%s227 + $0x74] sm:$0xf]
      %v248 = vld [vmem:[%s227 + $0x78] sm:$0xff]
      %v249 = vld [vmem:[%s227 + $0x80] sm:$0xf]
      %v253 = vunpack.c.l.b16 %v202
      %v254 = vunpack.c.l.b16 %v203
      %v255 = vunpack.c.l.b16 %v204
      %v256 = vpack.c.b16 %v254, %v253
      %v257 = vpack.c.b16 %v255, %v255
      %vm258 = vsmask.f32 7424
      %v260 = vshrl.u32 %v256, 16
      %v262 = vshll.u32 %v256, 16
      %v264 = vrot.slane %v262, 1
      %v265 = vor.u32 %v260, %v264
      %v267 = vshll.u32 %v257, 16
      %v269 = vrot.slane %v267, 1
      %v270 = vsel %vm258, %v265, %v269
      %v293 = vunpack.c.l.b16 %v228
      %v294 = vunpack.c.h.b16 %v228
      %v295 = vunpack.c.l.b16 %v229
      %v296 = vunpack.c.l.b16 %v230
      %v297 = vunpack.c.h.b16 %v230
      %v298 = vunpack.c.l.b16 %v231
      %v299 = vunpack.c.l.b16 %v232
      %v300 = vunpack.c.h.b16 %v232
      %v301 = vunpack.c.l.b16 %v233
      %v302 = vunpack.c.l.b16 %v234
      %v303 = vunpack.c.h.b16 %v234
      %v304 = vunpack.c.l.b16 %v235
      %v305 = vunpack.c.l.b16 %v236
      %v306 = vunpack.c.h.b16 %v236
      %v307 = vunpack.c.l.b16 %v237
      %v308 = vunpack.c.l.b16 %v238
      %v309 = vunpack.c.h.b16 %v238
      %v310 = vunpack.c.l.b16 %v239
      %v311 = vunpack.c.l.b16 %v240
      %v312 = vunpack.c.h.b16 %v240
      %v313 = vunpack.c.l.b16 %v241
      %v314 = vunpack.c.l.b16 %v242
      %v315 = vunpack.c.h.b16 %v242
      %v316 = vunpack.c.l.b16 %v243
      %v317 = vunpack.c.l.b16 %v244
      %v318 = vunpack.c.h.b16 %v244
      %v319 = vunpack.c.l.b16 %v245
      %v320 = vunpack.c.l.b16 %v246
      %v321 = vunpack.c.h.b16 %v246
      %v322 = vunpack.c.l.b16 %v247
      %v323 = vunpack.c.l.b16 %v248
      %v324 = vunpack.c.h.b16 %v248
      %v325 = vunpack.c.l.b16 %v249
      %v326 = vpack.c.b16 %v296, %v293
      %v327 = vpack.c.b16 %v297, %v294
      %v328 = vpack.c.b16 %v298, %v295
      %v329 = vpack.c.b16 %v302, %v299
      %v330 = vpack.c.b16 %v303, %v300
      %v331 = vpack.c.b16 %v304, %v301
      %v332 = vpack.c.b16 %v308, %v305
      %v333 = vpack.c.b16 %v309, %v306
      %v334 = vpack.c.b16 %v310, %v307
      %v335 = vpack.c.b16 %v314, %v311
      %v336 = vpack.c.b16 %v315, %v312
      %v337 = vpack.c.b16 %v316, %v313
      %v338 = vpack.c.b16 %v320, %v317
      %v339 = vpack.c.b16 %v321, %v318
      %v340 = vpack.c.b16 %v322, %v319
      %v341 = vpack.c.b16 %v323, %v323
      %v342 = vpack.c.b16 %v324, %v324
      %v343 = vpack.c.b16 %v325, %v325
      %vm359 = vcmask 719872
      %v361 = vsel %vm359, %v270, 0
      %vm363 = vcmask 1043456
      %v365 = vsel %vm363, %v341, 0
      %v368 = vsel %vm363, %v342, 0
      %v371 = vsel %vm363, %v343, 0
      %373 = vmatpush.bf16.msra.mxu0 0
      %374 = vmatpush.bf16.msra.mxu0 0
      %375 = vmatpush.bf16.msra.mxu0 %v365
      %376 = vmatpush.bf16.msra.mxu0 %v338
      %377 = vmatpush.bf16.msra.mxu0 %v335
      %378 = vmatpush.bf16.msra.mxu0 %v332
      %379 = vmatpush.bf16.msra.mxu0 %v329
      %380 = vmatpush.bf16.msra.mxu0 %v326
      %381 = vmatmul.bf16.gmra.mxu0 %v361
      %v382 = vpop.f32.mrf.mxu0
      %v383 = vadd.f32 0.0, %v382
      %v384 = vpop.f32.mrf.mxu0
      %v385 = vadd.f32 0.0, %v384
      %386 = vdwg.mxu0
      %387 = vmatpush.bf16.msra.mxu0 0
      %388 = vmatpush.bf16.msra.mxu0 0
      %389 = vmatpush.bf16.msra.mxu0 %v368
      %390 = vmatpush.bf16.msra.mxu0 %v339
      %391 = vmatpush.bf16.msra.mxu0 %v336
      %392 = vmatpush.bf16.msra.mxu0 %v333
      %393 = vmatpush.bf16.msra.mxu0 %v330
      %394 = vmatpush.bf16.msra.mxu0 %v327
      %395 = vmatmul.bf16.gmra.mxu0 %v361
      %v396 = vpop.f32.mrf.mxu0
      %v397 = vadd.f32 0.0, %v396
      %v398 = vpop.f32.mrf.mxu0
      %v399 = vadd.f32 0.0, %v398
      %400 = vdwg.mxu0
      %401 = vmatpush.bf16.msra.mxu0 0
      %402 = vmatpush.bf16.msra.mxu0 0
      %403 = vmatpush.bf16.msra.mxu0 %v371
      %404 = vmatpush.bf16.msra.mxu0 %v340
      %405 = vmatpush.bf16.msra.mxu0 %v337
      %406 = vmatpush.bf16.msra.mxu0 %v334
      %407 = vmatpush.bf16.msra.mxu0 %v331
      %408 = vmatpush.bf16.msra.mxu0 %v328
      %409 = vmatmul.bf16.gmra.mxu0 %v361
      %v410 = vpop.f32.mrf.mxu0
      %v411 = vadd.f32 0.0, %v410
      %v412 = vpop.f32.mrf.mxu0
      %v413 = vadd.f32 0.0, %v412
      %414 = vdwg.mxu0
      %v437 = vunpack.c.l.b16 %v205
      %v438 = vunpack.c.h.b16 %v205
      %v439 = vunpack.c.l.b16 %v206
      %v440 = vunpack.c.l.b16 %v207
      %v441 = vunpack.c.h.b16 %v207
      %v442 = vunpack.c.l.b16 %v208
      %v443 = vunpack.c.l.b16 %v209
      %v444 = vunpack.c.h.b16 %v209
      %v445 = vunpack.c.l.b16 %v210
      %v446 = vunpack.c.l.b16 %v211
      %v447 = vunpack.c.h.b16 %v211
      %v448 = vunpack.c.l.b16 %v212
      %v449 = vunpack.c.l.b16 %v213
      %v450 = vunpack.c.h.b16 %v213
      %v451 = vunpack.c.l.b16 %v214
      %v452 = vunpack.c.l.b16 %v215
      %v453 = vunpack.c.h.b16 %v215
      %v454 = vunpack.c.l.b16 %v216
      %v455 = vunpack.c.l.b16 %v217
      %v456 = vunpack.c.h.b16 %v217
      %v457 = vunpack.c.l.b16 %v218
      %v458 = vunpack.c.l.b16 %v219
      %v459 = vunpack.c.h.b16 %v219
      %v460 = vunpack.c.l.b16 %v220
      %v461 = vunpack.c.l.b16 %v221
      %v462 = vunpack.c.h.b16 %v221
      %v463 = vunpack.c.l.b16 %v222
      %v464 = vunpack.c.l.b16 %v223
      %v465 = vunpack.c.h.b16 %v223
      %v466 = vunpack.c.l.b16 %v224
      %v467 = vunpack.c.l.b16 %v225
      %v468 = vunpack.c.h.b16 %v225
      %v469 = vunpack.c.l.b16 %v226
      %v470 = vpack.c.b16 %v440, %v437
      %v471 = vpack.c.b16 %v441, %v438
      %v472 = vpack.c.b16 %v442, %v439
      %v473 = vpack.c.b16 %v446, %v443
      %v474 = vpack.c.b16 %v447, %v444
      %v475 = vpack.c.b16 %v448, %v445
      %v476 = vpack.c.b16 %v452, %v449
      %v477 = vpack.c.b16 %v453, %v450
      %v478 = vpack.c.b16 %v454, %v451
      %v479 = vpack.c.b16 %v458, %v455
      %v480 = vpack.c.b16 %v459, %v456
      %v481 = vpack.c.b16 %v460, %v457
      %v482 = vpack.c.b16 %v464, %v461
      %v483 = vpack.c.b16 %v465, %v462
      %v484 = vpack.c.b16 %v466, %v463
      %v485 = vpack.c.b16 %v467, %v467
      %v486 = vpack.c.b16 %v468, %v468
      %v487 = vpack.c.b16 %v469, %v469
      %v503 = vsel %vm359, %v256, 0
      %v506 = vsel %vm363, %v485, 0
      %v509 = vsel %vm363, %v486, 0
      %v512 = vsel %vm363, %v487, 0
      %514 = vmatpush.bf16.msra.mxu0 0
      %515 = vmatpush.bf16.msra.mxu0 0
      %516 = vmatpush.bf16.msra.mxu0 %v506
      %517 = vmatpush.bf16.msra.mxu0 %v482
      %518 = vmatpush.bf16.msra.mxu0 %v479
      %519 = vmatpush.bf16.msra.mxu0 %v476
      %520 = vmatpush.bf16.msra.mxu0 %v473
      %521 = vmatpush.bf16.msra.mxu0 %v470
      %522 = vmatmul.bf16.gmra.mxu0 %v503
      %v523 = vpop.f32.mrf.mxu0
      %v524 = vadd.f32 %v383, %v523
      %v525 = vpop.f32.mrf.mxu0
      %v526 = vadd.f32 %v385, %v525
      %527 = vdwg.mxu0
      %528 = vmatpush.bf16.msra.mxu0 0
      %529 = vmatpush.bf16.msra.mxu0 0
      %530 = vmatpush.bf16.msra.mxu0 %v509
      %531 = vmatpush.bf16.msra.mxu0 %v483
      %532 = vmatpush.bf16.msra.mxu0 %v480
      %533 = vmatpush.bf16.msra.mxu0 %v477
      %534 = vmatpush.bf16.msra.mxu0 %v474
      %535 = vmatpush.bf16.msra.mxu0 %v471
      %536 = vmatmul.bf16.gmra.mxu0 %v503
      %v537 = vpop.f32.mrf.mxu0
      %v538 = vadd.f32 %v397, %v537
      %v539 = vpop.f32.mrf.mxu0
      %v540 = vadd.f32 %v399, %v539
      %541 = vdwg.mxu0
      %542 = vmatpush.bf16.msra.mxu0 0
      %543 = vmatpush.bf16.msra.mxu0 0
      %544 = vmatpush.bf16.msra.mxu0 %v512
      %545 = vmatpush.bf16.msra.mxu0 %v484
      %546 = vmatpush.bf16.msra.mxu0 %v481
      %547 = vmatpush.bf16.msra.mxu0 %v478
      %548 = vmatpush.bf16.msra.mxu0 %v475
      %549 = vmatpush.bf16.msra.mxu0 %v472
      %550 = vmatmul.bf16.gmra.mxu0 %v503
      %v551 = vpop.f32.mrf.mxu0
      %v552 = vadd.f32 %v411, %v551
      %v553 = vpop.f32.mrf.mxu0
      %v554 = vadd.f32 %v413, %v553
      %555 = vdwg.mxu0
      %s556 = scalar_lea.vmem %s1, 264
      %v557 = vld [vmem:[%s556] sm:$0xff]
      %v558 = vld [vmem:[%s556 + $0x8] sm:$0xf]
      %v559 = vld [vmem:[%s556 + $0xc] sm:$0xff]
      %v560 = vld [vmem:[%s556 + $0x14] sm:$0xf]
      %v561 = vld [vmem:[%s556 + $0x18] sm:$0xff]
      %v562 = vld [vmem:[%s556 + $0x20] sm:$0xf]
      %v563 = vld [vmem:[%s556 + $0x24] sm:$0xff]
      %v564 = vld [vmem:[%s556 + $0x2c] sm:$0xf]
      %v565 = vld [vmem:[%s556 + $0x30] sm:$0xff]
      %v566 = vld [vmem:[%s556 + $0x38] sm:$0xf]
      %v567 = vld [vmem:[%s556 + $0x3c] sm:$0xff]
      %v568 = vld [vmem:[%s556 + $0x44] sm:$0xf]
      %v569 = vld [vmem:[%s556 + $0x48] sm:$0xff]
      %v570 = vld [vmem:[%s556 + $0x50] sm:$0xf]
      %v571 = vld [vmem:[%s556 + $0x54] sm:$0xff]
      %v572 = vld [vmem:[%s556 + $0x5c] sm:$0xf]
      %v573 = vld [vmem:[%s556 + $0x60] sm:$0xff]
      %v574 = vld [vmem:[%s556 + $0x68] sm:$0xf]
      %v575 = vld [vmem:[%s556 + $0x6c] sm:$0xff]
      %v576 = vld [vmem:[%s556 + $0x74] sm:$0xf]
      %v577 = vld [vmem:[%s556 + $0x78] sm:$0xff]
      %v578 = vld [vmem:[%s556 + $0x80] sm:$0xf]
      %vm579 = vcmask 1046528
      %v580 = vrot.slane %v256, 1
      %v581 = vrot.slane %v257, 1
      %v582 = vsel %vm579, %v580, %v581
      %v605 = vunpack.c.l.b16 %v557
      %v606 = vunpack.c.h.b16 %v557
      %v607 = vunpack.c.l.b16 %v558
      %v608 = vunpack.c.l.b16 %v559
      %v609 = vunpack.c.h.b16 %v559
      %v610 = vunpack.c.l.b16 %v560
      %v611 = vunpack.c.l.b16 %v561
      %v612 = vunpack.c.h.b16 %v561
      %v613 = vunpack.c.l.b16 %v562
      %v614 = vunpack.c.l.b16 %v563
      %v615 = vunpack.c.h.b16 %v563
      %v616 = vunpack.c.l.b16 %v564
      %v617 = vunpack.c.l.b16 %v565
      %v618 = vunpack.c.h.b16 %v565
      %v619 = vunpack.c.l.b16 %v566
      %v620 = vunpack.c.l.b16 %v567
      %v621 = vunpack.c.h.b16 %v567
      %v622 = vunpack.c.l.b16 %v568
      %v623 = vunpack.c.l.b16 %v569
      %v624 = vunpack.c.h.b16 %v569
      %v625 = vunpack.c.l.b16 %v570
      %v626 = vunpack.c.l.b16 %v571
      %v627 = vunpack.c.h.b16 %v571
      %v628 = vunpack.c.l.b16 %v572
      %v629 = vunpack.c.l.b16 %v573
      %v630 = vunpack.c.h.b16 %v573
      %v631 = vunpack.c.l.b16 %v574
      %v632 = vunpack.c.l.b16 %v575
      %v633 = vunpack.c.h.b16 %v575
      %v634 = vunpack.c.l.b16 %v576
      %v635 = vunpack.c.l.b16 %v577
      %v636 = vunpack.c.h.b16 %v577
      %v637 = vunpack.c.l.b16 %v578
      %v638 = vpack.c.b16 %v608, %v605
      %v639 = vpack.c.b16 %v609, %v606
      %v640 = vpack.c.b16 %v610, %v607
      %v641 = vpack.c.b16 %v614, %v611
      %v642 = vpack.c.b16 %v615, %v612
      %v643 = vpack.c.b16 %v616, %v613
      %v644 = vpack.c.b16 %v620, %v617
      %v645 = vpack.c.b16 %v621, %v618
      %v646 = vpack.c.b16 %v622, %v619
      %v647 = vpack.c.b16 %v626, %v623
      %v648 = vpack.c.b16 %v627, %v624
      %v649 = vpack.c.b16 %v628, %v625
      %v650 = vpack.c.b16 %v632, %v629
      %v651 = vpack.c.b16 %v633, %v630
      %v652 = vpack.c.b16 %v634, %v631
      %v653 = vpack.c.b16 %v635, %v635
      %v654 = vpack.c.b16 %v636, %v636
      %v655 = vpack.c.b16 %v637, %v637
      %v672 = vsel %vm359, %v582, 0
      %v675 = vsel %vm363, %v653, 0
      %v678 = vsel %vm363, %v654, 0
      %v681 = vsel %vm363, %v655, 0
      %683 = vmatpush.bf16.msra.mxu0 0
      %684 = vmatpush.bf16.msra.mxu0 0
      %685 = vmatpush.bf16.msra.mxu0 %v675
      %686 = vmatpush.bf16.msra.mxu0 %v650
      %687 = vmatpush.bf16.msra.mxu0 %v647
      %688 = vmatpush.bf16.msra.mxu0 %v644
      %689 = vmatpush.bf16.msra.mxu0 %v641
      %690 = vmatpush.bf16.msra.mxu0 %v638
      %691 = vmatmul.bf16.gmra.mxu0 %v672
      %v692 = vpop.f32.mrf.mxu0
      %v693 = vadd.f32 0.0, %v692
      %v694 = vpop.f32.mrf.mxu0
      %v695 = vadd.f32 0.0, %v694
      %696 = vdwg.mxu0
      %697 = vmatpush.bf16.msra.mxu0 0
      %698 = vmatpush.bf16.msra.mxu0 0
      %699 = vmatpush.bf16.msra.mxu0 %v678
      %700 = vmatpush.bf16.msra.mxu0 %v651
      %701 = vmatpush.bf16.msra.mxu0 %v648
      %702 = vmatpush.bf16.msra.mxu0 %v645
      %703 = vmatpush.bf16.msra.mxu0 %v642
      %704 = vmatpush.bf16.msra.mxu0 %v639
      %705 = vmatmul.bf16.gmra.mxu0 %v672
      %v706 = vpop.f32.mrf.mxu0
      %v707 = vadd.f32 0.0, %v706
      %v708 = vpop.f32.mrf.mxu0
      %v709 = vadd.f32 0.0, %v708
      %710 = vdwg.mxu0
      %711 = vmatpush.bf16.msra.mxu0 0
      %712 = vmatpush.bf16.msra.mxu0 0
      %713 = vmatpush.bf16.msra.mxu0 %v681
      %714 = vmatpush.bf16.msra.mxu0 %v652
      %715 = vmatpush.bf16.msra.mxu0 %v649
      %716 = vmatpush.bf16.msra.mxu0 %v646
      %717 = vmatpush.bf16.msra.mxu0 %v643
      %718 = vmatpush.bf16.msra.mxu0 %v640
      %719 = vmatmul.bf16.gmra.mxu0 %v672
      %v720 = vpop.f32.mrf.mxu0
      %v721 = vadd.f32 0.0, %v720
      %v722 = vpop.f32.mrf.mxu0
      %v723 = vadd.f32 0.0, %v722
      %724 = vdwg.mxu0
      %v725 = vadd.f32 %v524, %v693
      %v726 = vadd.f32 %v538, %v707
      %v727 = vadd.f32 %v552, %v721
      %v728 = vadd.f32 %v526, %v695
      %v729 = vadd.f32 %v540, %v709
      %v730 = vadd.f32 %v554, %v723
      %s731 = scalar_lea.vmem %s1, 396
      %v732 = vld [vmem:[%s731] sm:$0xff]
      %v733 = vld [vmem:[%s731 + $0x8] sm:$0xf]
      %v734 = vld [vmem:[%s731 + $0xc] sm:$0xff]
      %v735 = vld [vmem:[%s731 + $0x14] sm:$0xf]
      %v736 = vld [vmem:[%s731 + $0x18] sm:$0xff]
      %v737 = vld [vmem:[%s731 + $0x20] sm:$0xf]
      %v738 = vld [vmem:[%s731 + $0x24] sm:$0xff]
      %v739 = vld [vmem:[%s731 + $0x2c] sm:$0xf]
      %v740 = vld [vmem:[%s731 + $0x30] sm:$0xff]
      %v741 = vld [vmem:[%s731 + $0x38] sm:$0xf]
      %v742 = vld [vmem:[%s731 + $0x3c] sm:$0xff]
      %v743 = vld [vmem:[%s731 + $0x44] sm:$0xf]
      %v744 = vld [vmem:[%s731 + $0x48] sm:$0xff]
      %v745 = vld [vmem:[%s731 + $0x50] sm:$0xf]
      %v746 = vld [vmem:[%s731 + $0x54] sm:$0xff]
      %v747 = vld [vmem:[%s731 + $0x5c] sm:$0xf]
      %v748 = vld [vmem:[%s731 + $0x60] sm:$0xff]
      %v749 = vld [vmem:[%s731 + $0x68] sm:$0xf]
      %v750 = vld [vmem:[%s731 + $0x6c] sm:$0xff]
      %v751 = vld [vmem:[%s731 + $0x74] sm:$0xf]
      %v752 = vld [vmem:[%s731 + $0x78] sm:$0xff]
      %v753 = vld [vmem:[%s731 + $0x80] sm:$0xf]
      %vm754 = vsmask.f32 6400
      %v755 = vrot.slane %v260, 1
      %v756 = vrot.slane %v262, 2
      %v757 = vor.u32 %v755, %v756
      %v758 = vshrl.u32 %v257, 16
      %v760 = vrot.slane %v758, 1
      %v761 = vrot.slane %v267, 2
      %v762 = vor.u32 %v760, %v761
      %v763 = vsel %vm754, %v757, %v762
      %v786 = vunpack.c.l.b16 %v732
      %v787 = vunpack.c.h.b16 %v732
      %v788 = vunpack.c.l.b16 %v733
      %v789 = vunpack.c.l.b16 %v734
      %v790 = vunpack.c.h.b16 %v734
      %v791 = vunpack.c.l.b16 %v735
      %v792 = vunpack.c.l.b16 %v736
      %v793 = vunpack.c.h.b16 %v736
      %v794 = vunpack.c.l.b16 %v737
      %v795 = vunpack.c.l.b16 %v738
      %v796 = vunpack.c.h.b16 %v738
      %v797 = vunpack.c.l.b16 %v739
      %v798 = vunpack.c.l.b16 %v740
      %v799 = vunpack.c.h.b16 %v740
      %v800 = vunpack.c.l.b16 %v741
      %v801 = vunpack.c.l.b16 %v742
      %v802 = vunpack.c.h.b16 %v742
      %v803 = vunpack.c.l.b16 %v743
      %v804 = vunpack.c.l.b16 %v744
      %v805 = vunpack.c.h.b16 %v744
      %v806 = vunpack.c.l.b16 %v745
      %v807 = vunpack.c.l.b16 %v746
      %v808 = vunpack.c.h.b16 %v746
      %v809 = vunpack.c.l.b16 %v747
      %v810 = vunpack.c.l.b16 %v748
      %v811 = vunpack.c.h.b16 %v748
      %v812 = vunpack.c.l.b16 %v749
      %v813 = vunpack.c.l.b16 %v750
      %v814 = vunpack.c.h.b16 %v750
      %v815 = vunpack.c.l.b16 %v751
      %v816 = vunpack.c.l.b16 %v752
      %v817 = vunpack.c.h.b16 %v752
      %v818 = vunpack.c.l.b16 %v753
      %v819 = vpack.c.b16 %v789, %v786
      %v820 = vpack.c.b16 %v790, %v787
      %v821 = vpack.c.b16 %v791, %v788
      %v822 = vpack.c.b16 %v795, %v792
      %v823 = vpack.c.b16 %v796, %v793
      %v824 = vpack.c.b16 %v797, %v794
      %v825 = vpack.c.b16 %v801, %v798
      %v826 = vpack.c.b16 %v802, %v799
      %v827 = vpack.c.b16 %v803, %v800
      %v828 = vpack.c.b16 %v807, %v804
      %v829 = vpack.c.b16 %v808, %v805
      %v830 = vpack.c.b16 %v809, %v806
      %v831 = vpack.c.b16 %v813, %v810
      %v832 = vpack.c.b16 %v814, %v811
      %v833 = vpack.c.b16 %v815, %v812
      %v834 = vpack.c.b16 %v816, %v816
      %v835 = vpack.c.b16 %v817, %v817
      %v836 = vpack.c.b16 %v818, %v818
      %v853 = vsel %vm359, %v763, 0
      %v856 = vsel %vm363, %v834, 0
      %v859 = vsel %vm363, %v835, 0
      %v862 = vsel %vm363, %v836, 0
      %864 = vmatpush.bf16.msra.mxu0 0
      %865 = vmatpush.bf16.msra.mxu0 0
      %866 = vmatpush.bf16.msra.mxu0 %v856
      %867 = vmatpush.bf16.msra.mxu0 %v831
      %868 = vmatpush.bf16.msra.mxu0 %v828
      %869 = vmatpush.bf16.msra.mxu0 %v825
      %870 = vmatpush.bf16.msra.mxu0 %v822
      %871 = vmatpush.bf16.msra.mxu0 %v819
      %872 = vmatmul.bf16.gmra.mxu0 %v853
      %v873 = vpop.f32.mrf.mxu0
      %v874 = vadd.f32 0.0, %v873
      %v875 = vpop.f32.mrf.mxu0
      %v876 = vadd.f32 0.0, %v875
      %877 = vdwg.mxu0
      %878 = vmatpush.bf16.msra.mxu0 0
      %879 = vmatpush.bf16.msra.mxu0 0
      %880 = vmatpush.bf16.msra.mxu0 %v859
      %881 = vmatpush.bf16.msra.mxu0 %v832
      %882 = vmatpush.bf16.msra.mxu0 %v829
      %883 = vmatpush.bf16.msra.mxu0 %v826
      %884 = vmatpush.bf16.msra.mxu0 %v823
      %885 = vmatpush.bf16.msra.mxu0 %v820
      %886 = vmatmul.bf16.gmra.mxu0 %v853
      %v887 = vpop.f32.mrf.mxu0
      %v888 = vadd.f32 0.0, %v887
      %v889 = vpop.f32.mrf.mxu0
      %v890 = vadd.f32 0.0, %v889
      %891 = vdwg.mxu0
      %892 = vmatpush.bf16.msra.mxu0 0
      %893 = vmatpush.bf16.msra.mxu0 0
      %894 = vmatpush.bf16.msra.mxu0 %v862
      %895 = vmatpush.bf16.msra.mxu0 %v833
      %896 = vmatpush.bf16.msra.mxu0 %v830
      %897 = vmatpush.bf16.msra.mxu0 %v827
      %898 = vmatpush.bf16.msra.mxu0 %v824
      %899 = vmatpush.bf16.msra.mxu0 %v821
      %900 = vmatmul.bf16.gmra.mxu0 %v853
      %v901 = vpop.f32.mrf.mxu0
      %v902 = vadd.f32 0.0, %v901
      %v903 = vpop.f32.mrf.mxu0
      %v904 = vadd.f32 0.0, %v903
      %905 = vdwg.mxu0
      %v906 = vadd.f32 %v725, %v874
      %v907 = vadd.f32 %v726, %v888
      %v908 = vadd.f32 %v727, %v902
      %v909 = vadd.f32 %v728, %v876
      %v910 = vadd.f32 %v729, %v890
      %v911 = vadd.f32 %v730, %v904
      %s912 = scalar_lea.vmem %s1, 528
      %v913 = vld [vmem:[%s912] sm:$0xff]
      %v914 = vld [vmem:[%s912 + $0x8] sm:$0xf]
      %v915 = vld [vmem:[%s912 + $0xc] sm:$0xff]
      %v916 = vld [vmem:[%s912 + $0x14] sm:$0xf]
      %v917 = vld [vmem:[%s912 + $0x18] sm:$0xff]
      %v918 = vld [vmem:[%s912 + $0x20] sm:$0xf]
      %v919 = vld [vmem:[%s912 + $0x24] sm:$0xff]
      %v920 = vld [vmem:[%s912 + $0x2c] sm:$0xf]
      %v921 = vld [vmem:[%s912 + $0x30] sm:$0xff]
      %v922 = vld [vmem:[%s912 + $0x38] sm:$0xf]
      %v923 = vld [vmem:[%s912 + $0x3c] sm:$0xff]
      %v924 = vld [vmem:[%s912 + $0x44] sm:$0xf]
      %v925 = vld [vmem:[%s912 + $0x48] sm:$0xff]
      %v926 = vld [vmem:[%s912 + $0x50] sm:$0xf]
      %v927 = vld [vmem:[%s912 + $0x54] sm:$0xff]
      %v928 = vld [vmem:[%s912 + $0x5c] sm:$0xf]
      %v929 = vld [vmem:[%s912 + $0x60] sm:$0xff]
      %v930 = vld [vmem:[%s912 + $0x68] sm:$0xf]
      %v931 = vld [vmem:[%s912 + $0x6c] sm:$0xff]
      %v932 = vld [vmem:[%s912 + $0x74] sm:$0xf]
      %v933 = vld [vmem:[%s912 + $0x78] sm:$0xff]
      %v934 = vld [vmem:[%s912 + $0x80] sm:$0xf]
      %vm935 = vcmask 1045504
      %v936 = vrot.slane %v256, 2
      %v937 = vrot.slane %v257, 2
      %v938 = vsel %vm935, %v936, %v937
      %v961 = vunpack.c.l.b16 %v913
      %v962 = vunpack.c.h.b16 %v913
      %v963 = vunpack.c.l.b16 %v914
      %v964 = vunpack.c.l.b16 %v915
      %v965 = vunpack.c.h.b16 %v915
      %v966 = vunpack.c.l.b16 %v916
      %v967 = vunpack.c.l.b16 %v917
      %v968 = vunpack.c.h.b16 %v917
      %v969 = vunpack.c.l.b16 %v918
      %v970 = vunpack.c.l.b16 %v919
      %v971 = vunpack.c.h.b16 %v919
      %v972 = vunpack.c.l.b16 %v920
      %v973 = vunpack.c.l.b16 %v921
      %v974 = vunpack.c.h.b16 %v921
      %v975 = vunpack.c.l.b16 %v922
      %v976 = vunpack.c.l.b16 %v923
      %v977 = vunpack.c.h.b16 %v923
      %v978 = vunpack.c.l.b16 %v924
      %v979 = vunpack.c.l.b16 %v925
      %v980 = vunpack.c.h.b16 %v925
      %v981 = vunpack.c.l.b16 %v926
      %v982 = vunpack.c.l.b16 %v927
      %v983 = vunpack.c.h.b16 %v927
      %v984 = vunpack.c.l.b16 %v928
      %v985 = vunpack.c.l.b16 %v929
      %v986 = vunpack.c.h.b16 %v929
      %v987 = vunpack.c.l.b16 %v930
      %v988 = vunpack.c.l.b16 %v931
      %v989 = vunpack.c.h.b16 %v931
      %v990 = vunpack.c.l.b16 %v932
      %v991 = vunpack.c.l.b16 %v933
      %v992 = vunpack.c.h.b16 %v933
      %v993 = vunpack.c.l.b16 %v934
      %v994 = vpack.c.b16 %v964, %v961
      %v995 = vpack.c.b16 %v965, %v962
      %v996 = vpack.c.b16 %v966, %v963
      %v997 = vpack.c.b16 %v970, %v967
      %v998 = vpack.c.b16 %v971, %v968
      %v999 = vpack.c.b16 %v972, %v969
      %v1000 = vpack.c.b16 %v976, %v973
      %v1001 = vpack.c.b16 %v977, %v974
      %v1002 = vpack.c.b16 %v978, %v975
      %v1003 = vpack.c.b16 %v982, %v979
      %v1004 = vpack.c.b16 %v983, %v980
      %v1005 = vpack.c.b16 %v984, %v981
      %v1006 = vpack.c.b16 %v988, %v985
      %v1007 = vpack.c.b16 %v989, %v986
      %v1008 = vpack.c.b16 %v990, %v987
      %v1009 = vpack.c.b16 %v991, %v991
      %v1010 = vpack.c.b16 %v992, %v992
      %v1011 = vpack.c.b16 %v993, %v993
      %v1028 = vsel %vm359, %v938, 0
      %v1031 = vsel %vm363, %v1009, 0
      %v1034 = vsel %vm363, %v1010, 0
      %v1037 = vsel %vm363, %v1011, 0
      %1039 = vmatpush.bf16.msra.mxu0 0
      %1040 = vmatpush.bf16.msra.mxu0 0
      %1041 = vmatpush.bf16.msra.mxu0 %v1031
      %1042 = vmatpush.bf16.msra.mxu0 %v1006
      %1043 = vmatpush.bf16.msra.mxu0 %v1003
      %1044 = vmatpush.bf16.msra.mxu0 %v1000
      %1045 = vmatpush.bf16.msra.mxu0 %v997
      %1046 = vmatpush.bf16.msra.mxu0 %v994
      %1047 = vmatmul.bf16.gmra.mxu0 %v1028
      %v1048 = vpop.f32.mrf.mxu0
      %v1049 = vadd.f32 0.0, %v1048
      %v1050 = vpop.f32.mrf.mxu0
      %v1051 = vadd.f32 0.0, %v1050
      %1052 = vdwg.mxu0
      %1053 = vmatpush.bf16.msra.mxu0 0
      %1054 = vmatpush.bf16.msra.mxu0 0
      %1055 = vmatpush.bf16.msra.mxu0 %v1034
      %1056 = vmatpush.bf16.msra.mxu0 %v1007
      %1057 = vmatpush.bf16.msra.mxu0 %v1004
      %1058 = vmatpush.bf16.msra.mxu0 %v1001
      %1059 = vmatpush.bf16.msra.mxu0 %v998
      %1060 = vmatpush.bf16.msra.mxu0 %v995
      %1061 = vmatmul.bf16.gmra.mxu0 %v1028
      %v1062 = vpop.f32.mrf.mxu0
      %v1063 = vadd.f32 0.0, %v1062
      %v1064 = vpop.f32.mrf.mxu0
      %v1065 = vadd.f32 0.0, %v1064
      %1066 = vdwg.mxu0
      %1067 = vmatpush.bf16.msra.mxu0 0
      %1068 = vmatpush.bf16.msra.mxu0 0
      %1069 = vmatpush.bf16.msra.mxu0 %v1037
      %1070 = vmatpush.bf16.msra.mxu0 %v1008
      %1071 = vmatpush.bf16.msra.mxu0 %v1005
      %1072 = vmatpush.bf16.msra.mxu0 %v1002
      %1073 = vmatpush.bf16.msra.mxu0 %v999
      %1074 = vmatpush.bf16.msra.mxu0 %v996
      %1075 = vmatmul.bf16.gmra.mxu0 %v1028
      %v1076 = vpop.f32.mrf.mxu0
      %v1077 = vadd.f32 0.0, %v1076
      %v1078 = vpop.f32.mrf.mxu0
      %v1079 = vadd.f32 0.0, %v1078
      %1080 = vdwg.mxu0
      %v1081 = vadd.f32 %v906, %v1049
      %v1082 = vadd.f32 %v907, %v1063
      %v1083 = vadd.f32 %v908, %v1077
      %v1084 = vadd.f32 %v909, %v1051
      %v1085 = vadd.f32 %v910, %v1065
      %v1086 = vadd.f32 %v911, %v1079
      %s1087 = scalar_lea.vmem %s1, 660
      %v1088 = vld [vmem:[%s1087] sm:$0xff]
      %v1089 = vld [vmem:[%s1087 + $0x8] sm:$0xf]
      %v1090 = vld [vmem:[%s1087 + $0xc] sm:$0xff]
      %v1091 = vld [vmem:[%s1087 + $0x14] sm:$0xf]
      %v1092 = vld [vmem:[%s1087 + $0x18] sm:$0xff]
      %v1093 = vld [vmem:[%s1087 + $0x20] sm:$0xf]
      %v1094 = vld [vmem:[%s1087 + $0x24] sm:$0xff]
      %v1095 = vld [vmem:[%s1087 + $0x2c] sm:$0xf]
      %v1096 = vld [vmem:[%s1087 + $0x30] sm:$0xff]
      %v1097 = vld [vmem:[%s1087 + $0x38] sm:$0xf]
      %v1098 = vld [vmem:[%s1087 + $0x3c] sm:$0xff]
      %v1099 = vld [vmem:[%s1087 + $0x44] sm:$0xf]
      %v1100 = vld [vmem:[%s1087 + $0x48] sm:$0xff]
      %v1101 = vld [vmem:[%s1087 + $0x50] sm:$0xf]
      %v1102 = vld [vmem:[%s1087 + $0x54] sm:$0xff]
      %v1103 = vld [vmem:[%s1087 + $0x5c] sm:$0xf]
      %v1104 = vld [vmem:[%s1087 + $0x60] sm:$0xff]
      %v1105 = vld [vmem:[%s1087 + $0x68] sm:$0xf]
      %v1106 = vld [vmem:[%s1087 + $0x6c] sm:$0xff]
      %v1107 = vld [vmem:[%s1087 + $0x74] sm:$0xf]
      %v1108 = vld [vmem:[%s1087 + $0x78] sm:$0xff]
      %v1109 = vld [vmem:[%s1087 + $0x80] sm:$0xf]
      %vm1110 = vsmask.f32 5376
      %v1111 = vrot.slane %v260, 2
      %v1112 = vrot.slane %v262, 3
      %v1113 = vor.u32 %v1111, %v1112
      %v1114 = vrot.slane %v758, 2
      %v1115 = vrot.slane %v267, 3
      %v1116 = vor.u32 %v1114, %v1115
      %v1117 = vsel %vm1110, %v1113, %v1116
      %v1140 = vunpack.c.l.b16 %v1088
      %v1141 = vunpack.c.h.b16 %v1088
      %v1142 = vunpack.c.l.b16 %v1089
      %v1143 = vunpack.c.l.b16 %v1090
      %v1144 = vunpack.c.h.b16 %v1090
      %v1145 = vunpack.c.l.b16 %v1091
      %v1146 = vunpack.c.l.b16 %v1092
      %v1147 = vunpack.c.h.b16 %v1092
      %v1148 = vunpack.c.l.b16 %v1093
      %v1149 = vunpack.c.l.b16 %v1094
      %v1150 = vunpack.c.h.b16 %v1094
      %v1151 = vunpack.c.l.b16 %v1095
      %v1152 = vunpack.c.l.b16 %v1096
      %v1153 = vunpack.c.h.b16 %v1096
      %v1154 = vunpack.c.l.b16 %v1097
      %v1155 = vunpack.c.l.b16 %v1098
      %v1156 = vunpack.c.h.b16 %v1098
      %v1157 = vunpack.c.l.b16 %v1099
      %v1158 = vunpack.c.l.b16 %v1100
      %v1159 = vunpack.c.h.b16 %v1100
      %v1160 = vunpack.c.l.b16 %v1101
      %v1161 = vunpack.c.l.b16 %v1102
      %v1162 = vunpack.c.h.b16 %v1102
      %v1163 = vunpack.c.l.b16 %v1103
      %v1164 = vunpack.c.l.b16 %v1104
      %v1165 = vunpack.c.h.b16 %v1104
      %v1166 = vunpack.c.l.b16 %v1105
      %v1167 = vunpack.c.l.b16 %v1106
      %v1168 = vunpack.c.h.b16 %v1106
      %v1169 = vunpack.c.l.b16 %v1107
      %v1170 = vunpack.c.l.b16 %v1108
      %v1171 = vunpack.c.h.b16 %v1108
      %v1172 = vunpack.c.l.b16 %v1109
      %v1173 = vpack.c.b16 %v1143, %v1140
      %v1174 = vpack.c.b16 %v1144, %v1141
      %v1175 = vpack.c.b16 %v1145, %v1142
      %v1176 = vpack.c.b16 %v1149, %v1146
      %v1177 = vpack.c.b16 %v1150, %v1147
      %v1178 = vpack.c.b16 %v1151, %v1148
      %v1179 = vpack.c.b16 %v1155, %v1152
      %v1180 = vpack.c.b16 %v1156, %v1153
      %v1181 = vpack.c.b16 %v1157, %v1154
      %v1182 = vpack.c.b16 %v1161, %v1158
      %v1183 = vpack.c.b16 %v1162, %v1159
      %v1184 = vpack.c.b16 %v1163, %v1160
      %v1185 = vpack.c.b16 %v1167, %v1164
      %v1186 = vpack.c.b16 %v1168, %v1165
      %v1187 = vpack.c.b16 %v1169, %v1166
      %v1188 = vpack.c.b16 %v1170, %v1170
      %v1189 = vpack.c.b16 %v1171, %v1171
      %v1190 = vpack.c.b16 %v1172, %v1172
      %v1207 = vsel %vm359, %v1117, 0
      %v1210 = vsel %vm363, %v1188, 0
      %v1213 = vsel %vm363, %v1189, 0
      %v1216 = vsel %vm363, %v1190, 0
      %1218 = vmatpush.bf16.msra.mxu0 0
      %1219 = vmatpush.bf16.msra.mxu0 0
      %1220 = vmatpush.bf16.msra.mxu0 %v1210
      %1221 = vmatpush.bf16.msra.mxu0 %v1185
      %1222 = vmatpush.bf16.msra.mxu0 %v1182
      %1223 = vmatpush.bf16.msra.mxu0 %v1179
      %1224 = vmatpush.bf16.msra.mxu0 %v1176
      %1225 = vmatpush.bf16.msra.mxu0 %v1173
      %1226 = vmatmul.bf16.gmra.mxu0 %v1207
      %v1227 = vpop.f32.mrf.mxu0
      %v1228 = vadd.f32 0.0, %v1227
      %v1229 = vpop.f32.mrf.mxu0
      %v1230 = vadd.f32 0.0, %v1229
      %1231 = vdwg.mxu0
      %1232 = vmatpush.bf16.msra.mxu0 0
      %1233 = vmatpush.bf16.msra.mxu0 0
      %1234 = vmatpush.bf16.msra.mxu0 %v1213
      %1235 = vmatpush.bf16.msra.mxu0 %v1186
      %1236 = vmatpush.bf16.msra.mxu0 %v1183
      %1237 = vmatpush.bf16.msra.mxu0 %v1180
      %1238 = vmatpush.bf16.msra.mxu0 %v1177
      %1239 = vmatpush.bf16.msra.mxu0 %v1174
      %1240 = vmatmul.bf16.gmra.mxu0 %v1207
      %v1241 = vpop.f32.mrf.mxu0
      %v1242 = vadd.f32 0.0, %v1241
      %v1243 = vpop.f32.mrf.mxu0
      %v1244 = vadd.f32 0.0, %v1243
      %1245 = vdwg.mxu0
      %1246 = vmatpush.bf16.msra.mxu0 0
      %1247 = vmatpush.bf16.msra.mxu0 0
      %1248 = vmatpush.bf16.msra.mxu0 %v1216
      %1249 = vmatpush.bf16.msra.mxu0 %v1187
      %1250 = vmatpush.bf16.msra.mxu0 %v1184
      %1251 = vmatpush.bf16.msra.mxu0 %v1181
      %1252 = vmatpush.bf16.msra.mxu0 %v1178
      %1253 = vmatpush.bf16.msra.mxu0 %v1175
      %1254 = vmatmul.bf16.gmra.mxu0 %v1207
      %v1255 = vpop.f32.mrf.mxu0
      %v1256 = vadd.f32 0.0, %v1255
      %v1257 = vpop.f32.mrf.mxu0
      %v1258 = vadd.f32 0.0, %v1257
      %1259 = vdwg.mxu0
      %v1260 = vadd.f32 %v1081, %v1228
      %v1261 = vadd.f32 %v1082, %v1242
      %v1262 = vadd.f32 %v1083, %v1256
      %v1263 = vadd.f32 %v1084, %v1230
      %v1264 = vadd.f32 %v1085, %v1244
      %v1265 = vadd.f32 %v1086, %v1258
      %s1266 = scalar_lea.vmem %s1, 792
      %v1267 = vld [vmem:[%s1266] sm:$0xff]
      %v1268 = vld [vmem:[%s1266 + $0x8] sm:$0xf]
      %v1269 = vld [vmem:[%s1266 + $0xc] sm:$0xff]
      %v1270 = vld [vmem:[%s1266 + $0x14] sm:$0xf]
      %v1271 = vld [vmem:[%s1266 + $0x18] sm:$0xff]
      %v1272 = vld [vmem:[%s1266 + $0x20] sm:$0xf]
      %v1273 = vld [vmem:[%s1266 + $0x24] sm:$0xff]
      %v1274 = vld [vmem:[%s1266 + $0x2c] sm:$0xf]
      %v1275 = vld [vmem:[%s1266 + $0x30] sm:$0xff]
      %v1276 = vld [vmem:[%s1266 + $0x38] sm:$0xf]
      %v1277 = vld [vmem:[%s1266 + $0x3c] sm:$0xff]
      %v1278 = vld [vmem:[%s1266 + $0x44] sm:$0xf]
      %v1279 = vld [vmem:[%s1266 + $0x48] sm:$0xff]
      %v1280 = vld [vmem:[%s1266 + $0x50] sm:$0xf]
      %v1281 = vld [vmem:[%s1266 + $0x54] sm:$0xff]
      %v1282 = vld [vmem:[%s1266 + $0x5c] sm:$0xf]
      %v1283 = vld [vmem:[%s1266 + $0x60] sm:$0xff]
      %v1284 = vld [vmem:[%s1266 + $0x68] sm:$0xf]
      %v1285 = vld [vmem:[%s1266 + $0x6c] sm:$0xff]
      %v1286 = vld [vmem:[%s1266 + $0x74] sm:$0xf]
      %v1287 = vld [vmem:[%s1266 + $0x78] sm:$0xff]
      %v1288 = vld [vmem:[%s1266 + $0x80] sm:$0xf]
      %vm1289 = vcmask 1044480
      %v1290 = vrot.slane %v256, 3
      %v1291 = vrot.slane %v257, 3
      %v1292 = vsel %vm1289, %v1290, %v1291
      %v1315 = vunpack.c.l.b16 %v1267
      %v1316 = vunpack.c.h.b16 %v1267
      %v1317 = vunpack.c.l.b16 %v1268
      %v1318 = vunpack.c.l.b16 %v1269
      %v1319 = vunpack.c.h.b16 %v1269
      %v1320 = vunpack.c.l.b16 %v1270
      %v1321 = vunpack.c.l.b16 %v1271
      %v1322 = vunpack.c.h.b16 %v1271
      %v1323 = vunpack.c.l.b16 %v1272
      %v1324 = vunpack.c.l.b16 %v1273
      %v1325 = vunpack.c.h.b16 %v1273
      %v1326 = vunpack.c.l.b16 %v1274
      %v1327 = vunpack.c.l.b16 %v1275
      %v1328 = vunpack.c.h.b16 %v1275
      %v1329 = vunpack.c.l.b16 %v1276
      %v1330 = vunpack.c.l.b16 %v1277
      %v1331 = vunpack.c.h.b16 %v1277
      %v1332 = vunpack.c.l.b16 %v1278
      %v1333 = vunpack.c.l.b16 %v1279
      %v1334 = vunpack.c.h.b16 %v1279
      %v1335 = vunpack.c.l.b16 %v1280
      %v1336 = vunpack.c.l.b16 %v1281
      %v1337 = vunpack.c.h.b16 %v1281
      %v1338 = vunpack.c.l.b16 %v1282
      %v1339 = vunpack.c.l.b16 %v1283
      %v1340 = vunpack.c.h.b16 %v1283
      %v1341 = vunpack.c.l.b16 %v1284
      %v1342 = vunpack.c.l.b16 %v1285
      %v1343 = vunpack.c.h.b16 %v1285
      %v1344 = vunpack.c.l.b16 %v1286
      %v1345 = vunpack.c.l.b16 %v1287
      %v1346 = vunpack.c.h.b16 %v1287
      %v1347 = vunpack.c.l.b16 %v1288
      %v1348 = vpack.c.b16 %v1318, %v1315
      %v1349 = vpack.c.b16 %v1319, %v1316
      %v1350 = vpack.c.b16 %v1320, %v1317
      %v1351 = vpack.c.b16 %v1324, %v1321
      %v1352 = vpack.c.b16 %v1325, %v1322
      %v1353 = vpack.c.b16 %v1326, %v1323
      %v1354 = vpack.c.b16 %v1330, %v1327
      %v1355 = vpack.c.b16 %v1331, %v1328
      %v1356 = vpack.c.b16 %v1332, %v1329
      %v1357 = vpack.c.b16 %v1336, %v1333
      %v1358 = vpack.c.b16 %v1337, %v1334
      %v1359 = vpack.c.b16 %v1338, %v1335
      %v1360 = vpack.c.b16 %v1342, %v1339
      %v1361 = vpack.c.b16 %v1343, %v1340
      %v1362 = vpack.c.b16 %v1344, %v1341
      %v1363 = vpack.c.b16 %v1345, %v1345
      %v1364 = vpack.c.b16 %v1346, %v1346
      %v1365 = vpack.c.b16 %v1347, %v1347
      %v1382 = vsel %vm359, %v1292, 0
      %v1385 = vsel %vm363, %v1363, 0
      %v1388 = vsel %vm363, %v1364, 0
      %v1391 = vsel %vm363, %v1365, 0
      %1393 = vmatpush.bf16.msra.mxu0 0
      %1394 = vmatpush.bf16.msra.mxu0 0
      %1395 = vmatpush.bf16.msra.mxu0 %v1385
      %1396 = vmatpush.bf16.msra.mxu0 %v1360
      %1397 = vmatpush.bf16.msra.mxu0 %v1357
      %1398 = vmatpush.bf16.msra.mxu0 %v1354
      %1399 = vmatpush.bf16.msra.mxu0 %v1351
      %1400 = vmatpush.bf16.msra.mxu0 %v1348
      %1401 = vmatmul.bf16.gmra.mxu0 %v1382
      %v1402 = vpop.f32.mrf.mxu0
      %v1403 = vadd.f32 0.0, %v1402
      %v1404 = vpop.f32.mrf.mxu0
      %v1405 = vadd.f32 0.0, %v1404
      %1406 = vdwg.mxu0
      %1407 = vmatpush.bf16.msra.mxu0 0
      %1408 = vmatpush.bf16.msra.mxu0 0
      %1409 = vmatpush.bf16.msra.mxu0 %v1388
      %1410 = vmatpush.bf16.msra.mxu0 %v1361
      %1411 = vmatpush.bf16.msra.mxu0 %v1358
      %1412 = vmatpush.bf16.msra.mxu0 %v1355
      %1413 = vmatpush.bf16.msra.mxu0 %v1352
      %1414 = vmatpush.bf16.msra.mxu0 %v1349
      %1415 = vmatmul.bf16.gmra.mxu0 %v1382
      %v1416 = vpop.f32.mrf.mxu0
      %v1417 = vadd.f32 0.0, %v1416
      %v1418 = vpop.f32.mrf.mxu0
      %v1419 = vadd.f32 0.0, %v1418
      %1420 = vdwg.mxu0
      %1421 = vmatpush.bf16.msra.mxu0 0
      %1422 = vmatpush.bf16.msra.mxu0 0
      %1423 = vmatpush.bf16.msra.mxu0 %v1391
      %1424 = vmatpush.bf16.msra.mxu0 %v1362
      %1425 = vmatpush.bf16.msra.mxu0 %v1359
      %1426 = vmatpush.bf16.msra.mxu0 %v1356
      %1427 = vmatpush.bf16.msra.mxu0 %v1353
      %1428 = vmatpush.bf16.msra.mxu0 %v1350
      %1429 = vmatmul.bf16.gmra.mxu0 %v1382
      %v1430 = vpop.f32.mrf.mxu0
      %v1431 = vadd.f32 0.0, %v1430
      %v1432 = vpop.f32.mrf.mxu0
      %v1433 = vadd.f32 0.0, %v1432
      %1434 = vdwg.mxu0
      %v1435 = vadd.f32 %v1260, %v1403
      %v1436 = vadd.f32 %v1261, %v1417
      %v1437 = vadd.f32 %v1262, %v1431
      %v1438 = vadd.f32 %v1263, %v1405
      %v1439 = vadd.f32 %v1264, %v1419
      %v1440 = vadd.f32 %v1265, %v1433
      %v1441 = vld [vmem:[%s2] sm:$0x7]
      %v1443 = vperm.slane %v1441, 0
      %v1444 = vperm.slane %v1441, 1
      %v1445 = vperm.slane %v1441, 2
      %v1449 = vmul.f32 %v1435, %v1443
      %v1450 = vmul.f32 %v1436, %v1444
      %v1451 = vmul.f32 %v1437, %v1445
      %v1452 = vmul.f32 %v1438, %v1443
      %v1453 = vmul.f32 %v1439, %v1444
      %v1454 = vmul.f32 %v1440, %v1445
      %v1455 = vld [vmem:[%s3] sm:$0x7]
      %v1457 = vperm.slane %v1455, 0
      %v1458 = vperm.slane %v1455, 1
      %v1459 = vperm.slane %v1455, 2
      %v1463 = vadd.f32 %v1449, %v1457
      %v1464 = vadd.f32 %v1450, %v1458
      %v1465 = vadd.f32 %v1451, %v1459
      %v1466 = vadd.f32 %v1452, %v1457
      %v1467 = vadd.f32 %v1453, %v1458
      %v1468 = vadd.f32 %v1454, %v1459
      %v1469 = vmax.f32 %v1463, 0.0
      %v1470 = vmax.f32 %v1464, 0.0
      %v1471 = vmax.f32 %v1465, 0.0
      %v1472 = vmax.f32 %v1466, 0.0
      %v1473 = vmax.f32 %v1467, 0.0
      %v1474 = vmax.f32 %v1468, 0.0
      %v1475 = vpack.c.bf16 %v1470, %v1469
      %v1476 = vpack.c.bf16 %v1471, %v1471
      %v1477 = vpack.c.bf16 %v1473, %v1472
      %v1478 = vpack.c.bf16 %v1474, %v1474
      %1479 = vst [vmem:[%s199] sm:$0xff] %v1475
      %1480 = vst [vmem:[%s199 + $0x8] sm:$0xf] %v1476
      %1481 = vst [vmem:[%s199 + $0xc] sm:$0xff] %v1477
      %1482 = vst [vmem:[%s199 + $0x14] sm:$0xf] %v1478
      %s1483 = smul.u32 2, %s15
      %p1484 = scmp.lt.s32.totalorder %s1483, 3
      %s1485 = scalar_select %p1484, %s1483, 3
      %s1486 = smul.addr %s1485, 3
      %s1487 = smul.addr %s1486, 4
      %s1488 = scalar_lea.vmem %s4, %s1487
      // Predicated region
      $region37: #{multi_res_mlp.3} parent=35 // pred_check
        %p1489 = pneg %p122
      $region38: #{multi_res_mlp.3} parent=35 // pred_check_branch
        %1491 = sbr.rel (%p1489) target = $region40
      $region39: #{multi_res_mlp.3} parent=35 // pred_region
        %s1492 = smul.u32 2, %s15
      $region40: #{multi_res_mlp.3} parent=35 // pred_fallthru
        _
    $region36: #{multi_res_mlp.3} parent=5 // pred_fallthru
      _
    %p1493 = scmp.le.s32.totalorder 2, %s10
    // Predicated region
    $region41: #{multi_res_mlp.3} parent=5 // pred_check
      %p1494 = pneg %p1493
    $region42: #{multi_res_mlp.3} parent=5 // pred_check_branch
      %1496 = sbr.rel (%p1494) target = $region44
    $region43: #{multi_res_mlp.3} parent=5 // pred_region
      %s1497 = ssub.s32 %s10, 2
      // Predicated region
      $region45: #{multi_res_mlp.3} parent=43 // pred_check
        %p1498 = pneg %p128
      $region46: #{multi_res_mlp.3} parent=43 // pred_check_branch
        %1500 = sbr.rel (%p1498) target = $region48
      $region47: #{multi_res_mlp.3} parent=43 // pred_region
        %s1501 = smul.u32 2, %s16
        %p1502 = scmp.lt.s32.totalorder %s1501, 3
        %s1503 = scalar_select %p1502, %s1501, 3
        %s1504 = smul.addr %s1503, 3
        %s1505 = smul.addr %s1504, 4
        %s1506 = scalar_lea.vmem %s4, %s1505
      $region48: #{multi_res_mlp.3} parent=43 // pred_fallthru
        _
    $region44: #{multi_res_mlp.3} parent=5 // pred_fallthru
      _
  $region6: #{multi_res_mlp.3} parent=0 // loop_footer
    %s14 = sadd.s32 1, %s10
  $region7: #{multi_res_mlp.3} parent=0 // loop_footer_branch
    %9 = sbr.rel target = $region3
  $region8: #{multi_res_mlp.3} parent=0 // loop_exit
    _

</llo_original>
